<compile_context>
chip_gen: v5e
topology: v5e:2x2
jax: 0.10.0
libtpu: 0.0.40
codegen_flags: <defaults>
</compile_context>

<pallas_src>
import math
from functools import partial

import jax
import jax.numpy as jnp
from jax.experimental import pallas as pl
from jax.experimental.pallas import tpu as pltpu


# --------------------------------- kernel ---------------------------------

def _sab_kernel(x_ref, wqkv_ref, bqkv_ref, wo_ref, bo_ref, o_ref,
                *, dim_V, num_heads):
    # x_ref:    [Bt, N, dim_in]    f32   (Bt batch elements per grid step)
    # wqkv_ref: [dim_in, 3*dim_V]  bf16  columns = [Wq | Wk/sqrt(dim_V) | Wv], head-major inside
    # bqkv_ref: [1, 3*dim_V]       f32
    # wo_ref:   [dim_V, dim_V]     bf16  ("x @ W" convention)
    # bo_ref:   [1, dim_V]         f32
    # o_ref:    [Bt, N, dim_V]
    Bt, N, dim_in = x_ref.shape
    R = Bt * N
    H = num_heads
    ds = dim_V // H

    # ---- fused lane-dense QKV projection: ONE bf16 MXU matmul, f32 accumulation.
    x2 = x_ref[...].reshape(R, dim_in).astype(jnp.bfloat16)
    qkv = jnp.dot(x2, wqkv_ref[...], preferred_element_type=jnp.float32) + bqkv_ref[...]

    # ---- gather all heads into one (H*Bt)-way leading batch dim.
    # TODO(synk): with dim_V a multiple of 128 (real-model sizing) these per-head
    # lane slices become vreg-tile aligned; for very large R stage qkv in a VMEM
    # scratch and read 128-aligned slabs from it instead of slicing the value.
    def head_batch(col0):
        parts = [qkv[:, col0 + h * ds: col0 + (h + 1) * ds] for h in range(H)]
        return jnp.stack(parts, axis=0).reshape(H * Bt, N, ds)   # index = h*Bt + b

    q = head_batch(0)              # f32, unscaled (feeds the residual)
    k = head_batch(dim_V)          # pre-scaled by 1/sqrt(dim_V) in the wrapper
    v = head_batch(2 * dim_V)

    # ---- attention for ALL heads/batches: two batched MXU matmuls (bf16 in,
    # f32 acc) and one f32 softmax.
    s = jnp.einsum('bqd,bkd->bqk', q.astype(jnp.bfloat16), k.astype(jnp.bfloat16),
                   preferred_element_type=jnp.float32)
    s = s - jnp.max(s, axis=-1, keepdims=True)
    p = jnp.exp(s)
    inv = pl.reciprocal(jnp.sum(p, axis=-1, keepdims=True), approx=True)   # EUP slot
    a = (p * inv).astype(jnp.bfloat16)
    pv = jnp.einsum('bqk,bkd->bqd', a, v.astype(jnp.bfloat16),
                    preferred_element_type=jnp.float32)
    o_h = q + pv                                                   # residual in f32
    # TODO(synk): for N >~ 1k tile the key axis flash-style (running max/sum)
    # instead of holding the full [H*Bt, N, N] logits in VMEM.

    # ---- single lane-dense reassembly [Bt, N, dim_V] (head h -> lanes h*ds..),
    # then one unmasked store path through the FC/residual below.
    o = jnp.concatenate([o_h[h * Bt:(h + 1) * Bt] for h in range(H)], axis=-1)
    o = o.reshape(R, dim_V)

    # ---- output FC + ReLU residual (bf16 MXU operands, f32 elsewhere).
    ff = jnp.dot(o.astype(jnp.bfloat16), wo_ref[...],
                 preferred_element_type=jnp.float32) + bo_ref[...]
    y = o + jnp.maximum(ff, 0.0)
    o_ref[...] = y.reshape(Bt, N, dim_V).astype(o_ref.dtype)
    # TODO(synk): mask / query_mask arguments and the ln=True LayerNorm branch of
    # MAB are not implemented (SAB default path uses mask=None, ln=False).


# ------------------------- sizing / wrapper helpers -------------------------

def _vmem_budget_bytes():
    """Per-step VMEM budget. v5e/v6e: 128 MiB physical, v7x: 64 MiB; keep ~30%
    headroom for Mosaic-internal scratch."""
    try:
        phys = int(pltpu.get_tpu_info().vmem_capacity_bytes)
    except Exception:
        phys = 64 << 20          # conservative (v7x-sized) fallback
    return int(phys * 0.7)


def _step_vmem_bytes(bt, N, dim_in, dim_V, num_heads, buffered_weights=True):
    """Rough per-grid-step VMEM footprint in bytes (double-buffered I/O blocks,
    weight buffers, f32/bf16 intermediates, per-head logits)."""
    R, G = bt * N, bt * num_heads
    io = 2 * R * (dim_in + dim_V) * 4                               # x / out blocks, x2 buffers
    w = (1 if buffered_weights else 2) * (
        (3 * dim_in * dim_V + dim_V * dim_V) * 2 + 4 * dim_V * 4)   # bf16 weights + f32 biases
    inter = (9 * R * dim_V + R * dim_in) * 4                        # qkv, q/k/v, pv, o, y (f32)
    inter += (4 * R * dim_V + R * dim_in) * 2                       # bf16 MXU operand copies
    inter += G * N * N * 10                                         # logits + probs f32, a bf16
    return io + w + inter


def _pick_block_b(B, N, dim_in, dim_V, num_heads, vmem_budget,
                  target_rows=1024, buffered_weights=True):
    """Batch elements per grid step.  Priorities: (1) fit the VMEM budget,
    (2) keep >= 2 grid steps when B allows it (v7x has 2 TensorCores and
    ("parallel",) shards the grid across them), (3) make Bt*N as large as
    possible (up to ~target_rows, multiple of 8 preferred) to amortize the
    ~0.35us per-grid-step overhead and keep the MXU fed."""
    divisors = [d for d in range(1, B + 1) if B % d == 0]
    fits = [d for d in divisors
            if _step_vmem_bytes(d, N, dim_in, dim_V, num_heads, buffered_weights) <= vmem_budget]
    if not fits:
        fits = [1]
    multi = [d for d in fits if B // d >= 2]          # prefer >= 2 grid steps
    cands = multi if multi else fits
    under = [d for d in cands if d * N <= max(target_rows, N)]
    if not under:
        return min(cands)
    aligned = [d for d in under if (d * N) % 8 == 0]
    return max(aligned) if aligned else max(under)


def sab_forward(x, w_qkv, b_qkv, w_o, b_o, *, dim_V, num_heads, block_b=None):
    B, N, dim_in = x.shape
    budget = _vmem_budget_bytes()

    def build_and_run(buffered_weights):
        Bt = (_pick_block_b(B, N, dim_in, dim_V, num_heads, budget,
                            buffered_weights=buffered_weights)
              if block_b is None else block_b)
        assert B % Bt == 0, (B, Bt)
        footprint = _step_vmem_bytes(Bt, N, dim_in, dim_V, num_heads, buffered_weights)
        vmem_limit = int(min(budget, max(32 << 20, 2 * footprint)))
        kernel = partial(_sab_kernel, dim_V=dim_V, num_heads=num_heads)

        def const_spec(a):
            nd = a.ndim
            idx = lambda b, _nd=nd: (0,) * _nd
            if buffered_weights:
                # Grid-invariant weight/bias blocks: single-buffered to halve
                # their VMEM footprint (matters most on v7x's 64 MiB).
                return pl.BlockSpec(a.shape, idx, pipeline_mode=pl.Buffered(1))
            return pl.BlockSpec(a.shape, idx)

        return pl.pallas_call(
            kernel,
            # NOTE: if the surrounding model runs in bf16, make this bf16 to
            # halve output writeback DMA; kept at x.dtype (f32) here.
            out_shape=jax.ShapeDtypeStruct((B, N, dim_V), x.dtype),
            grid=(B // Bt,),
            in_specs=[
                pl.BlockSpec((Bt, N, dim_in), lambda b: (b, 0, 0)),
                const_spec(w_qkv), const_spec(b_qkv),
                const_spec(w_o), const_spec(b_o),
            ],
            out_specs=pl.BlockSpec((Bt, N, dim_V), lambda b: (b, 0, 0)),
            compiler_params=pltpu.CompilerParams(
                dimension_semantics=("parallel",),
                vmem_limit_bytes=vmem_limit),
        )(x, w_qkv, b_qkv, w_o, b_o)

    try:
        return build_and_run(buffered_weights=True)
    except Exception:
        # pipeline_mode=pl.Buffered(1) support varies across JAX releases; retry
        # with default double-buffered weight blocks (numerically identical).
        return build_and_run(buffered_weights=False)


# ---------------- parameter setup (PyTorch-Linear-style init) ----------------

def _linear_params(kw, kb, fan_in, fan_out):
    bound = 1.0 / math.sqrt(fan_in)
    w = jax.random.uniform(kw, (fan_out, fan_in), jnp.float32, -bound, bound)
    b = jax.random.uniform(kb, (fan_out,), jnp.float32, -bound, bound)
    return w, b  # PyTorch convention: y = x @ w.T + b


def make_sab_params(key, dim_in, dim_V):
    keys = jax.random.split(key, 8)
    Wq, bq = _linear_params(keys[0], keys[1], dim_in, dim_V)
    Wk, bk = _linear_params(keys[2], keys[3], dim_in, dim_V)
    Wv, bv = _linear_params(keys[4], keys[5], dim_in, dim_V)
    Wo, bo = _linear_params(keys[6], keys[7], dim_V, dim_V)
    return Wq, bq, Wk, bk, Wv, bv, Wo, bo


def pack_sab_params(Wq, bq, Wk, bk, Wv, bv, Wo, bo, dim_V):
    """Pre-transpose to the "x @ W" convention, fuse Q/K/V into one weight, fold
    the 1/sqrt(dim_V) attention scale into K (never into Q: Q feeds the residual
    unscaled), and cast the MXU weight operands to bf16 (halves weight DMA)."""
    scale = 1.0 / math.sqrt(dim_V)
    w_qkv = jnp.concatenate([Wq.T, Wk.T * scale, Wv.T], axis=1).astype(jnp.bfloat16)
    b_qkv = jnp.concatenate([bq, bk * scale, bv], axis=0).reshape(1, 3 * dim_V).astype(jnp.float32)
    # TODO(synk): on v7x optionally quantize w_qkv / w_o to fp8 (per-channel
    # scales) for ~2x MXU throughput; kept bf16 here for accuracy.
    return w_qkv, b_qkv, Wo.T.astype(jnp.bfloat16), bo.reshape(1, dim_V).astype(jnp.float32)


# ---------------- pure-JAX reference (mirrors the PyTorch MAB forward) ----------------

def sab_ref(x, Wq, bq, Wk, bk, Wv, bv, Wo, bo, dim_V, num_heads):
    Q = x @ Wq.T + bq
    K = x @ Wk.T + bk
    V = x @ Wv.T + bv
    ds = dim_V // num_heads
    B = x.shape[0]

    def split_cat(T):  # torch.cat(T.split(ds, 2), 0)
        return jnp.concatenate([T[:, :, h * ds:(h + 1) * ds] for h in range(num_heads)], axis=0)

    Q_, K_, V_ = split_cat(Q), split_cat(K), split_cat(V)
    attn = jnp.einsum('bqd,bkd->bqk', Q_, K_) / math.sqrt(dim_V)
    A = jax.nn.softmax(attn, axis=2)
    O = Q_ + jnp.einsum('bqk,bkd->bqd', A, V_)
    O = jnp.concatenate([O[h * B:(h + 1) * B] for h in range(num_heads)], axis=2)
    O = O + jax.nn.relu(O @ Wo.T + bo)
    return O


if __name__ == "__main__":
    B, N = 2, 8
    dim_in, dim_out, num_heads = 16, 32, 4

    key = jax.random.PRNGKey(0)
    kx, kp = jax.random.split(key)
    x = jax.random.normal(kx, (B, N, dim_in), jnp.float32)

    params = make_sab_params(kp, dim_in, dim_out)
    w_qkv, b_qkv, w_o, b_o = pack_sab_params(*params, dim_out)

    out = sab_forward(x, w_qkv, b_qkv, w_o, b_o, dim_V=dim_out, num_heads=num_heads)
    out = jax.block_until_ready(out)

    ref = sab_ref(x, *params, dim_out, num_heads)
    assert out.shape == (B, N, dim_out)
    err = float(jnp.max(jnp.abs(out - ref)))
    scale = float(jnp.max(jnp.abs(ref)))
    # tolerance covers bf16 MXU operands and pl.reciprocal(approx=True) softmax
    # normalization versus the pure-f32 reference
    assert err <= 5e-2 + 2e-2 * scale, (err, scale)

    print("KERNEL_OK")
</pallas_src>

<mosaic_0001>
module attributes {stable_mosaic.version = 11 : i64} {
  func.func @_sab_kernel(%arg0: i32, %arg1: memref<1x8x16xf32, #tpu.memory_space<vmem>>, %arg2: memref<16x96xbf16, #tpu.memory_space<vmem>>, %arg3: memref<1x96xf32, #tpu.memory_space<vmem>>, %arg4: memref<32x32xbf16, #tpu.memory_space<vmem>>, %arg5: memref<1x32xf32, #tpu.memory_space<vmem>>, %arg6: memref<1x8x32xf32, #tpu.memory_space<vmem>>) attributes {dimension_semantics = [#tpu.dimension_semantics<parallel>], iteration_bounds = array<i64: 2>, scalar_prefetch = 0 : i64, scratch_operands = 0 : i64, tpu.core_type = #tpu.core_type<tc>, window_params = [{transform_indices = @transform_0, window_bounds = array<i64: 1, 8, 16>}, {pipeline_mode = #tpu.pipeline_mode<synchronous>, transform_indices = @transform_1, window_bounds = array<i64: 16, 96>}, {pipeline_mode = #tpu.pipeline_mode<synchronous>, transform_indices = @transform_2, window_bounds = array<i64: 1, 96>}, {pipeline_mode = #tpu.pipeline_mode<synchronous>, transform_indices = @transform_3, window_bounds = array<i64: 32, 32>}, {pipeline_mode = #tpu.pipeline_mode<synchronous>, transform_indices = @transform_4, window_bounds = array<i64: 1, 32>}, {transform_indices = @transform_5, window_bounds = array<i64: 1, 8, 32>}]} {
    %c0 = arith.constant 0 : index
    %c0_0 = arith.constant 0 : index
    %c0_1 = arith.constant 0 : index
    %0 = vector.load %arg1[%c0, %c0_0, %c0_1] : memref<1x8x16xf32, #tpu.memory_space<vmem>>, vector<1x8x16xf32>
    %1 = vector.shape_cast %0 : vector<1x8x16xf32> to vector<8x16xf32>
    %2 = arith.truncf %1 : vector<8x16xf32> to vector<8x16xbf16>
    %c0_2 = arith.constant 0 : index
    %c0_3 = arith.constant 0 : index
    %3 = vector.load %arg2[%c0_2, %c0_3] : memref<16x96xbf16, #tpu.memory_space<vmem>>, vector<16x96xbf16>
    %cst = arith.constant dense<0.000000e+00> : vector<8x96xf32>
    %4 = tpu.matmul %2, %3, %cst {dimension_numbers = #tpu.dot_dimension_numbers<[1], [0], [0], [1], [0, 0, 1, 1], [], []>} : vector<8x16xbf16>, vector<16x96xbf16>, vector<8x96xf32> -> vector<8x96xf32>
    %c0_4 = arith.constant 0 : index
    %c0_5 = arith.constant 0 : index
    %5 = vector.load %arg3[%c0_4, %c0_5] : memref<1x96xf32, #tpu.memory_space<vmem>>, vector<1x96xf32>
    %6 = vector.broadcast %5 : vector<1x96xf32> to vector<8x96xf32>
    %7 = arith.addf %4, %6 : vector<8x96xf32>
    %8 = vector.extract_strided_slice %7 {offsets = [0, 0], sizes = [8, 8], strides = [1, 1]} : vector<8x96xf32> to vector<8x8xf32>
    %9 = vector.extract_strided_slice %7 {offsets = [0, 8], sizes = [8, 8], strides = [1, 1]} : vector<8x96xf32> to vector<8x8xf32>
    %10 = vector.extract_strided_slice %7 {offsets = [0, 16], sizes = [8, 8], strides = [1, 1]} : vector<8x96xf32> to vector<8x8xf32>
    %11 = vector.extract_strided_slice %7 {offsets = [0, 24], sizes = [8, 8], strides = [1, 1]} : vector<8x96xf32> to vector<8x8xf32>
    %12 = vector.shape_cast %8 : vector<8x8xf32> to vector<1x8x8xf32>
    %13 = vector.shape_cast %9 : vector<8x8xf32> to vector<1x8x8xf32>
    %14 = vector.shape_cast %10 : vector<8x8xf32> to vector<1x8x8xf32>
    %15 = vector.shape_cast %11 : vector<8x8xf32> to vector<1x8x8xf32>
    %16 = tpu.concatenate %12, %13, %14, %15 in 0 : vector<1x8x8xf32>, vector<1x8x8xf32>, vector<1x8x8xf32>, vector<1x8x8xf32> -> vector<4x8x8xf32>
    %17 = vector.extract_strided_slice %7 {offsets = [0, 32], sizes = [8, 8], strides = [1, 1]} : vector<8x96xf32> to vector<8x8xf32>
    %18 = vector.extract_strided_slice %7 {offsets = [0, 40], sizes = [8, 8], strides = [1, 1]} : vector<8x96xf32> to vector<8x8xf32>
    %19 = vector.extract_strided_slice %7 {offsets = [0, 48], sizes = [8, 8], strides = [1, 1]} : vector<8x96xf32> to vector<8x8xf32>
    %20 = vector.extract_strided_slice %7 {offsets = [0, 56], sizes = [8, 8], strides = [1, 1]} : vector<8x96xf32> to vector<8x8xf32>
    %21 = vector.shape_cast %17 : vector<8x8xf32> to vector<1x8x8xf32>
    %22 = vector.shape_cast %18 : vector<8x8xf32> to vector<1x8x8xf32>
    %23 = vector.shape_cast %19 : vector<8x8xf32> to vector<1x8x8xf32>
    %24 = vector.shape_cast %20 : vector<8x8xf32> to vector<1x8x8xf32>
    %25 = tpu.concatenate %21, %22, %23, %24 in 0 : vector<1x8x8xf32>, vector<1x8x8xf32>, vector<1x8x8xf32>, vector<1x8x8xf32> -> vector<4x8x8xf32>
    %26 = vector.extract_strided_slice %7 {offsets = [0, 64], sizes = [8, 8], strides = [1, 1]} : vector<8x96xf32> to vector<8x8xf32>
    %27 = vector.extract_strided_slice %7 {offsets = [0, 72], sizes = [8, 8], strides = [1, 1]} : vector<8x96xf32> to vector<8x8xf32>
    %28 = vector.extract_strided_slice %7 {offsets = [0, 80], sizes = [8, 8], strides = [1, 1]} : vector<8x96xf32> to vector<8x8xf32>
    %29 = vector.extract_strided_slice %7 {offsets = [0, 88], sizes = [8, 8], strides = [1, 1]} : vector<8x96xf32> to vector<8x8xf32>
    %30 = vector.shape_cast %26 : vector<8x8xf32> to vector<1x8x8xf32>
    %31 = vector.shape_cast %27 : vector<8x8xf32> to vector<1x8x8xf32>
    %32 = vector.shape_cast %28 : vector<8x8xf32> to vector<1x8x8xf32>
    %33 = vector.shape_cast %29 : vector<8x8xf32> to vector<1x8x8xf32>
    %34 = tpu.concatenate %30, %31, %32, %33 in 0 : vector<1x8x8xf32>, vector<1x8x8xf32>, vector<1x8x8xf32>, vector<1x8x8xf32> -> vector<4x8x8xf32>
    %35 = arith.truncf %16 : vector<4x8x8xf32> to vector<4x8x8xbf16>
    %36 = arith.truncf %25 : vector<4x8x8xf32> to vector<4x8x8xbf16>
    "tpu.trace_start"() <{level = 10 : i32, message = "bqd,bkd->bqk"}> : () -> ()
    %cst_6 = arith.constant dense<0.000000e+00> : vector<4x8x8xf32>
    %37 = tpu.matmul %35, %36, %cst_6 {dimension_numbers = #tpu.dot_dimension_numbers<[2], [2], [1], [1], [0, 0, 0, 1, 1, 1], [0], [0]>} : vector<4x8x8xbf16>, vector<4x8x8xbf16>, vector<4x8x8xf32> -> vector<4x8x8xf32>
    "tpu.trace_stop"() : () -> ()
    %cst_7 = arith.constant dense<0xFF800000> : vector<4x8xf32>
    %38 = vector.multi_reduction <maximumf>, %37, %cst_7 [2] : vector<4x8x8xf32> to vector<4x8xf32>
    %39 = vector.shape_cast %38 : vector<4x8xf32> to vector<4x8x1xf32>
    %40 = vector.broadcast %39 : vector<4x8x1xf32> to vector<4x8x8xf32>
    %41 = arith.subf %37, %40 : vector<4x8x8xf32>
    %42 = math.exp %41 : vector<4x8x8xf32>
    %cst_8 = arith.constant dense<0.000000e+00> : vector<4x8xf32>
    %43 = vector.multi_reduction <add>, %42, %cst_8 [2] : vector<4x8x8xf32> to vector<4x8xf32>
    %44 = vector.shape_cast %43 : vector<4x8xf32> to vector<4x8x1xf32>
    %45 = tpu.reciprocal %44 {approx = true} : vector<4x8x1xf32> -> vector<4x8x1xf32>
    %46 = vector.broadcast %45 : vector<4x8x1xf32> to vector<4x8x8xf32>
    %47 = arith.mulf %42, %46 : vector<4x8x8xf32>
    %48 = arith.truncf %47 : vector<4x8x8xf32> to vector<4x8x8xbf16>
    %49 = arith.truncf %34 : vector<4x8x8xf32> to vector<4x8x8xbf16>
    "tpu.trace_start"() <{level = 10 : i32, message = "bqk,bkd->bqd"}> : () -> ()
    %cst_9 = arith.constant dense<0.000000e+00> : vector<4x8x8xf32>
    %50 = tpu.matmul %48, %49, %cst_9 {dimension_numbers = #tpu.dot_dimension_numbers<[2], [1], [1], [2], [0, 0, 0, 1, 1, 2], [0], [0]>} : vector<4x8x8xbf16>, vector<4x8x8xbf16>, vector<4x8x8xf32> -> vector<4x8x8xf32>
    "tpu.trace_stop"() : () -> ()
    %51 = arith.addf %16, %50 : vector<4x8x8xf32>
    %52 = vector.extract_strided_slice %51 {offsets = [0, 0, 0], sizes = [1, 8, 8], strides = [1, 1, 1]} : vector<4x8x8xf32> to vector<1x8x8xf32>
    %53 = vector.extract_strided_slice %51 {offsets = [1, 0, 0], sizes = [1, 8, 8], strides = [1, 1, 1]} : vector<4x8x8xf32> to vector<1x8x8xf32>
    %54 = vector.extract_strided_slice %51 {offsets = [2, 0, 0], sizes = [1, 8, 8], strides = [1, 1, 1]} : vector<4x8x8xf32> to vector<1x8x8xf32>
    %55 = vector.extract_strided_slice %51 {offsets = [3, 0, 0], sizes = [1, 8, 8], strides = [1, 1, 1]} : vector<4x8x8xf32> to vector<1x8x8xf32>
    %56 = tpu.concatenate %52, %53, %54, %55 in 2 : vector<1x8x8xf32>, vector<1x8x8xf32>, vector<1x8x8xf32>, vector<1x8x8xf32> -> vector<1x8x32xf32>
    %57 = vector.shape_cast %56 : vector<1x8x32xf32> to vector<8x32xf32>
    %58 = arith.truncf %57 : vector<8x32xf32> to vector<8x32xbf16>
    %c0_10 = arith.constant 0 : index
    %c0_11 = arith.constant 0 : index
    %59 = vector.load %arg4[%c0_10, %c0_11] : memref<32x32xbf16, #tpu.memory_space<vmem>>, vector<32x32xbf16>
    %cst_12 = arith.constant dense<0.000000e+00> : vector<8x32xf32>
    %60 = tpu.matmul %58, %59, %cst_12 {dimension_numbers = #tpu.dot_dimension_numbers<[1], [0], [0], [1], [0, 0, 1, 1], [], []>} : vector<8x32xbf16>, vector<32x32xbf16>, vector<8x32xf32> -> vector<8x32xf32>
    %c0_13 = arith.constant 0 : index
    %c0_14 = arith.constant 0 : index
    %61 = vector.load %arg5[%c0_13, %c0_14] : memref<1x32xf32, #tpu.memory_space<vmem>>, vector<1x32xf32>
    %62 = vector.broadcast %61 : vector<1x32xf32> to vector<8x32xf32>
    %63 = arith.addf %60, %62 : vector<8x32xf32>
    %cst_15 = arith.constant 0.000000e+00 : f32
    %64 = vector.broadcast %cst_15 : f32 to vector<8x32xf32>
    %65 = arith.maximumf %63, %64 : vector<8x32xf32>
    %66 = arith.addf %57, %65 : vector<8x32xf32>
    %67 = vector.shape_cast %66 : vector<8x32xf32> to vector<1x8x32xf32>
    %c0_16 = arith.constant 0 : index
    %c0_17 = arith.constant 0 : index
    %c0_18 = arith.constant 0 : index
    %68 = vector.load %arg6[%c0_16, %c0_17, %c0_18] : memref<1x8x32xf32, #tpu.memory_space<vmem>>, vector<1x8x32xf32>
    tpu.vector_store %arg6[%c0_16, %c0_17, %c0_18], %67 {strides = array<i32>} : memref<1x8x32xf32, #tpu.memory_space<vmem>>, vector<1x8x32xf32>,
    return
  }
  func.func @transform_0(%arg0: i32) -> (i32, i32, i32) {
    %c0_i32 = arith.constant 0 : i32
    %c0_i32_0 = arith.constant 0 : i32
    %c0_i32_1 = arith.constant 0 : i32
    return %arg0, %c0_i32, %c0_i32_0 : i32, i32, i32
  }
  func.func @transform_1(%arg0: i32) -> (i32, i32) {
    %c0_i32 = arith.constant 0 : i32
    %c0_i32_0 = arith.constant 0 : i32
    %c0_i32_1 = arith.constant 0 : i32
    return %c0_i32, %c0_i32_0 : i32, i32
  }
  func.func @transform_2(%arg0: i32) -> (i32, i32) {
    %c0_i32 = arith.constant 0 : i32
    %c0_i32_0 = arith.constant 0 : i32
    %c0_i32_1 = arith.constant 0 : i32
    return %c0_i32, %c0_i32_0 : i32, i32
  }
  func.func @transform_3(%arg0: i32) -> (i32, i32) {
    %c0_i32 = arith.constant 0 : i32
    %c0_i32_0 = arith.constant 0 : i32
    %c0_i32_1 = arith.constant 0 : i32
    return %c0_i32, %c0_i32_0 : i32, i32
  }
  func.func @transform_4(%arg0: i32) -> (i32, i32) {
    %c0_i32 = arith.constant 0 : i32
    %c0_i32_0 = arith.constant 0 : i32
    %c0_i32_1 = arith.constant 0 : i32
    return %c0_i32, %c0_i32_0 : i32, i32
  }
  func.func @transform_5(%arg0: i32) -> (i32, i32, i32) {
    %c0_i32 = arith.constant 0 : i32
    %c0_i32_0 = arith.constant 0 : i32
    %c0_i32_1 = arith.constant 0 : i32
    return %arg0, %c0_i32, %c0_i32_0 : i32, i32, i32
  }
}

module attributes {stable_mosaic.version = 11 : i64} {
  func.func @_sab_kernel(%arg0: i32, %arg1: memref<1x8x16xf32, #tpu.memory_space<vmem>>, %arg2: memref<16x96xbf16, #tpu.memory_space<vmem>>, %arg3: memref<1x96xf32, #tpu.memory_space<vmem>>, %arg4: memref<32x32xbf16, #tpu.memory_space<vmem>>, %arg5: memref<1x32xf32, #tpu.memory_space<vmem>>, %arg6: memref<1x8x32xf32, #tpu.memory_space<vmem>>) attributes {dimension_semantics = [#tpu.dimension_semantics<parallel>], iteration_bounds = array<i64: 2>, scalar_prefetch = 0 : i64, scratch_operands = 0 : i64, tpu.core_type = #tpu.core_type<tc>, window_params = [{transform_indices = @transform_0, window_bounds = array<i64: 1, 8, 16>}, {pipeline_mode = #tpu.pipeline_mode<synchronous>, transform_indices = @transform_1, window_bounds = array<i64: 16, 96>}, {pipeline_mode = #tpu.pipeline_mode<synchronous>, transform_indices = @transform_2, window_bounds = array<i64: 1, 96>}, {pipeline_mode = #tpu.pipeline_mode<synchronous>, transform_indices = @transform_3, window_bounds = array<i64: 32, 32>}, {pipeline_mode = #tpu.pipeline_mode<synchronous>, transform_indices = @transform_4, window_bounds = array<i64: 1, 32>}, {transform_indices = @transform_5, window_bounds = array<i64: 1, 8, 32>}]} {
    %c0 = arith.constant 0 : index
    %c0_0 = arith.constant 0 : index
    %c0_1 = arith.constant 0 : index
    %0 = vector.load %arg1[%c0, %c0_0, %c0_1] : memref<1x8x16xf32, #tpu.memory_space<vmem>>, vector<1x8x16xf32>
    %1 = vector.shape_cast %0 : vector<1x8x16xf32> to vector<8x16xf32>
    %2 = arith.truncf %1 : vector<8x16xf32> to vector<8x16xbf16>
    %c0_2 = arith.constant 0 : index
    %c0_3 = arith.constant 0 : index
    %3 = vector.load %arg2[%c0_2, %c0_3] : memref<16x96xbf16, #tpu.memory_space<vmem>>, vector<16x96xbf16>
    %cst = arith.constant dense<0.000000e+00> : vector<8x96xf32>
    %4 = tpu.matmul %2, %3, %cst {dimension_numbers = #tpu.dot_dimension_numbers<[1], [0], [0], [1], [0, 0, 1, 1], [], []>} : vector<8x16xbf16>, vector<16x96xbf16>, vector<8x96xf32> -> vector<8x96xf32>
    %c0_4 = arith.constant 0 : index
    %c0_5 = arith.constant 0 : index
    %5 = vector.load %arg3[%c0_4, %c0_5] : memref<1x96xf32, #tpu.memory_space<vmem>>, vector<1x96xf32>
    %6 = vector.broadcast %5 : vector<1x96xf32> to vector<8x96xf32>
    %7 = arith.addf %4, %6 : vector<8x96xf32>
    %8 = vector.extract_strided_slice %7 {offsets = [0, 0], sizes = [8, 8], strides = [1, 1]} : vector<8x96xf32> to vector<8x8xf32>
    %9 = vector.extract_strided_slice %7 {offsets = [0, 8], sizes = [8, 8], strides = [1, 1]} : vector<8x96xf32> to vector<8x8xf32>
    %10 = vector.extract_strided_slice %7 {offsets = [0, 16], sizes = [8, 8], strides = [1, 1]} : vector<8x96xf32> to vector<8x8xf32>
    %11 = vector.extract_strided_slice %7 {offsets = [0, 24], sizes = [8, 8], strides = [1, 1]} : vector<8x96xf32> to vector<8x8xf32>
    %12 = vector.shape_cast %8 : vector<8x8xf32> to vector<1x8x8xf32>
    %13 = vector.shape_cast %9 : vector<8x8xf32> to vector<1x8x8xf32>
    %14 = vector.shape_cast %10 : vector<8x8xf32> to vector<1x8x8xf32>
    %15 = vector.shape_cast %11 : vector<8x8xf32> to vector<1x8x8xf32>
    %16 = tpu.concatenate %12, %13, %14, %15 in 0 : vector<1x8x8xf32>, vector<1x8x8xf32>, vector<1x8x8xf32>, vector<1x8x8xf32> -> vector<4x8x8xf32>
    %17 = vector.extract_strided_slice %7 {offsets = [0, 32], sizes = [8, 8], strides = [1, 1]} : vector<8x96xf32> to vector<8x8xf32>
    %18 = vector.extract_strided_slice %7 {offsets = [0, 40], sizes = [8, 8], strides = [1, 1]} : vector<8x96xf32> to vector<8x8xf32>
    %19 = vector.extract_strided_slice %7 {offsets = [0, 48], sizes = [8, 8], strides = [1, 1]} : vector<8x96xf32> to vector<8x8xf32>
    %20 = vector.extract_strided_slice %7 {offsets = [0, 56], sizes = [8, 8], strides = [1, 1]} : vector<8x96xf32> to vector<8x8xf32>
    %21 = vector.shape_cast %17 : vector<8x8xf32> to vector<1x8x8xf32>
    %22 = vector.shape_cast %18 : vector<8x8xf32> to vector<1x8x8xf32>
    %23 = vector.shape_cast %19 : vector<8x8xf32> to vector<1x8x8xf32>
    %24 = vector.shape_cast %20 : vector<8x8xf32> to vector<1x8x8xf32>
    %25 = tpu.concatenate %21, %22, %23, %24 in 0 : vector<1x8x8xf32>, vector<1x8x8xf32>, vector<1x8x8xf32>, vector<1x8x8xf32> -> vector<4x8x8xf32>
    %26 = vector.extract_strided_slice %7 {offsets = [0, 64], sizes = [8, 8], strides = [1, 1]} : vector<8x96xf32> to vector<8x8xf32>
    %27 = vector.extract_strided_slice %7 {offsets = [0, 72], sizes = [8, 8], strides = [1, 1]} : vector<8x96xf32> to vector<8x8xf32>
    %28 = vector.extract_strided_slice %7 {offsets = [0, 80], sizes = [8, 8], strides = [1, 1]} : vector<8x96xf32> to vector<8x8xf32>
    %29 = vector.extract_strided_slice %7 {offsets = [0, 88], sizes = [8, 8], strides = [1, 1]} : vector<8x96xf32> to vector<8x8xf32>
    %30 = vector.shape_cast %26 : vector<8x8xf32> to vector<1x8x8xf32>
    %31 = vector.shape_cast %27 : vector<8x8xf32> to vector<1x8x8xf32>
    %32 = vector.shape_cast %28 : vector<8x8xf32> to vector<1x8x8xf32>
    %33 = vector.shape_cast %29 : vector<8x8xf32> to vector<1x8x8xf32>
    %34 = tpu.concatenate %30, %31, %32, %33 in 0 : vector<1x8x8xf32>, vector<1x8x8xf32>, vector<1x8x8xf32>, vector<1x8x8xf32> -> vector<4x8x8xf32>
    %35 = arith.truncf %16 : vector<4x8x8xf32> to vector<4x8x8xbf16>
    %36 = arith.truncf %25 : vector<4x8x8xf32> to vector<4x8x8xbf16>
    "tpu.trace_start"() <{level = 10 : i32, message = "bqd,bkd->bqk"}> : () -> ()
    %cst_6 = arith.constant dense<0.000000e+00> : vector<4x8x8xf32>
    %37 = tpu.matmul %35, %36, %cst_6 {dimension_numbers = #tpu.dot_dimension_numbers<[2], [2], [1], [1], [0, 0, 0, 1, 1, 1], [0], [0]>} : vector<4x8x8xbf16>, vector<4x8x8xbf16>, vector<4x8x8xf32> -> vector<4x8x8xf32>
    "tpu.trace_stop"() : () -> ()
    %cst_7 = arith.constant dense<0xFF800000> : vector<4x8xf32>
    %38 = vector.multi_reduction <maximumf>, %37, %cst_7 [2] : vector<4x8x8xf32> to vector<4x8xf32>
    %39 = vector.shape_cast %38 : vector<4x8xf32> to vector<4x8x1xf32>
    %40 = vector.broadcast %39 : vector<4x8x1xf32> to vector<4x8x8xf32>
    %41 = arith.subf %37, %40 : vector<4x8x8xf32>
    %42 = math.exp %41 : vector<4x8x8xf32>
    %cst_8 = arith.constant dense<0.000000e+00> : vector<4x8xf32>
    %43 = vector.multi_reduction <add>, %42, %cst_8 [2] : vector<4x8x8xf32> to vector<4x8xf32>
    %44 = vector.shape_cast %43 : vector<4x8xf32> to vector<4x8x1xf32>
    %45 = tpu.reciprocal %44 {approx = true} : vector<4x8x1xf32> -> vector<4x8x1xf32>
    %46 = vector.broadcast %45 : vector<4x8x1xf32> to vector<4x8x8xf32>
    %47 = arith.mulf %42, %46 : vector<4x8x8xf32>
    %48 = arith.truncf %47 : vector<4x8x8xf32> to vector<4x8x8xbf16>
    %49 = arith.truncf %34 : vector<4x8x8xf32> to vector<4x8x8xbf16>
    "tpu.trace_start"() <{level = 10 : i32, message = "bqk,bkd->bqd"}> : () -> ()
    %cst_9 = arith.constant dense<0.000000e+00> : vector<4x8x8xf32>
    %50 = tpu.matmul %48, %49, %cst_9 {dimension_numbers = #tpu.dot_dimension_numbers<[2], [1], [1], [2], [0, 0, 0, 1, 1, 2], [0], [0]>} : vector<4x8x8xbf16>, vector<4x8x8xbf16>, vector<4x8x8xf32> -> vector<4x8x8xf32>
    "tpu.trace_stop"() : () -> ()
    %51 = arith.addf %16, %50 : vector<4x8x8xf32>
    %52 = vector.extract_strided_slice %51 {offsets = [0, 0, 0], sizes = [1, 8, 8], strides = [1, 1, 1]} : vector<4x8x8xf32> to vector<1x8x8xf32>
    %53 = vector.extract_strided_slice %51 {offsets = [1, 0, 0], sizes = [1, 8, 8], strides = [1, 1, 1]} : vector<4x8x8xf32> to vector<1x8x8xf32>
    %54 = vector.extract_strided_slice %51 {offsets = [2, 0, 0], sizes = [1, 8, 8], strides = [1, 1, 1]} : vector<4x8x8xf32> to vector<1x8x8xf32>
    %55 = vector.extract_strided_slice %51 {offsets = [3, 0, 0], sizes = [1, 8, 8], strides = [1, 1, 1]} : vector<4x8x8xf32> to vector<1x8x8xf32>
    %56 = tpu.concatenate %52, %53, %54, %55 in 2 : vector<1x8x8xf32>, vector<1x8x8xf32>, vector<1x8x8xf32>, vector<1x8x8xf32> -> vector<1x8x32xf32>
    %57 = vector.shape_cast %56 : vector<1x8x32xf32> to vector<8x32xf32>
    %58 = arith.truncf %57 : vector<8x32xf32> to vector<8x32xbf16>
    %c0_10 = arith.constant 0 : index
    %c0_11 = arith.constant 0 : index
    %59 = vector.load %arg4[%c0_10, %c0_11] : memref<32x32xbf16, #tpu.memory_space<vmem>>, vector<32x32xbf16>
    %cst_12 = arith.constant dense<0.000000e+00> : vector<8x32xf32>
    %60 = tpu.matmul %58, %59, %cst_12 {dimension_numbers = #tpu.dot_dimension_numbers<[1], [0], [0], [1], [0, 0, 1, 1], [], []>} : vector<8x32xbf16>, vector<32x32xbf16>, vector<8x32xf32> -> vector<8x32xf32>
    %c0_13 = arith.constant 0 : index
    %c0_14 = arith.constant 0 : index
    %61 = vector.load %arg5[%c0_13, %c0_14] : memref<1x32xf32, #tpu.memory_space<vmem>>, vector<1x32xf32>
    %62 = vector.broadcast %61 : vector<1x32xf32> to vector<8x32xf32>
    %63 = arith.addf %60, %62 : vector<8x32xf32>
    %cst_15 = arith.constant 0.000000e+00 : f32
    %64 = vector.broadcast %cst_15 : f32 to vector<8x32xf32>
    %65 = arith.maximumf %63, %64 : vector<8x32xf32>
    %66 = arith.addf %57, %65 : vector<8x32xf32>
    %67 = vector.shape_cast %66 : vector<8x32xf32> to vector<1x8x32xf32>
    %c0_16 = arith.constant 0 : index
    %c0_17 = arith.constant 0 : index
    %c0_18 = arith.constant 0 : index
    %68 = vector.load %arg6[%c0_16, %c0_17, %c0_18] : memref<1x8x32xf32, #tpu.memory_space<vmem>>, vector<1x8x32xf32>
    tpu.vector_store %arg6[%c0_16, %c0_17, %c0_18], %67 {strides = array<i32>} : memref<1x8x32xf32, #tpu.memory_space<vmem>>, vector<1x8x32xf32>,
    return
  }
  func.func @transform_0(%arg0: i32) -> (i32, i32, i32) {
    %c0_i32 = arith.constant 0 : i32
    %c0_i32_0 = arith.constant 0 : i32
    %c0_i32_1 = arith.constant 0 : i32
    return %arg0, %c0_i32, %c0_i32_0 : i32, i32, i32
  }
  func.func @transform_1(%arg0: i32) -> (i32, i32) {
    %c0_i32 = arith.constant 0 : i32
    %c0_i32_0 = arith.constant 0 : i32
    %c0_i32_1 = arith.constant 0 : i32
    return %c0_i32, %c0_i32_0 : i32, i32
  }
  func.func @transform_2(%arg0: i32) -> (i32, i32) {
    %c0_i32 = arith.constant 0 : i32
    %c0_i32_0 = arith.constant 0 : i32
    %c0_i32_1 = arith.constant 0 : i32
    return %c0_i32, %c0_i32_0 : i32, i32
  }
  func.func @transform_3(%arg0: i32) -> (i32, i32) {
    %c0_i32 = arith.constant 0 : i32
    %c0_i32_0 = arith.constant 0 : i32
    %c0_i32_1 = arith.constant 0 : i32
    return %c0_i32, %c0_i32_0 : i32, i32
  }
  func.func @transform_4(%arg0: i32) -> (i32, i32) {
    %c0_i32 = arith.constant 0 : i32
    %c0_i32_0 = arith.constant 0 : i32
    %c0_i32_1 = arith.constant 0 : i32
    return %c0_i32, %c0_i32_0 : i32, i32
  }
  func.func @transform_5(%arg0: i32) -> (i32, i32, i32) {
    %c0_i32 = arith.constant 0 : i32
    %c0_i32_0 = arith.constant 0 : i32
    %c0_i32_1 = arith.constant 0 : i32
    return %arg0, %c0_i32, %c0_i32_0 : i32, i32, i32
  }
}

</mosaic_0001>

<llo_original>
// kernel: tpu_custom_call.1
$region0: #{tpu_custom_call.1}
  #allocation0 [shape = 'u32[]', space=smem, size = 0x4, offset = 0x4, fixed_abs, tag = 'smem constant byte address 0x4 - core index']
  #allocation1 [shape = 'u32[72,128]{1,0:T(1,128)}', space=vmem, size = 0x9000, scoped, tag = 'internal scratch']
  %s0 = inlined_call_operand.hbm [shape: f32[2,8,16], index: 0, kind: input, shape index: {}]
  %s1 = inlined_call_operand.hbm [shape: bf16[16,96], index: 1, kind: input, shape index: {}]
  %s2 = inlined_call_operand.vmem [shape: f32[1,96], index: 2, kind: input, shape index: {}]
  %s3 = inlined_call_operand.hbm [shape: bf16[32,32], index: 3, kind: input, shape index: {}]
  %s4 = inlined_call_operand.vmem [shape: f32[1,32], index: 4, kind: input, shape index: {}]
  %s5 = inlined_call_operand.hbm [shape: f32[2,8,32], index: 5, kind: output, shape index: {}]
  %s6 = sld [smem:[#allocation0]]
  $region65: #{tpu_custom_call.1} parent=0
    _
  %s8 = ssub.s32 1, %s6
  %s9 = scalar_select 0, %s8, %s6
  $region1: #{tpu_custom_call.1} parent=0
    #allocation2 [shape = 'u8[8192]{0}', space=vmem, size = 0x2000, scoped, tag = 'input window, operand 0']
    #allocation3 [shape = 's32[2]{0}', space=sflag, size = 0x8, scoped, tag = 'scoped memory for tpu_custom_call.1']
    #allocation4 [shape = 's32[2]{0}', space=sflag, size = 0x8, scoped, tag = 'scoped memory for tpu_custom_call.1']
    #allocation5 [shape = 'u8[4096]{0}', space=vmem, size = 0x1000, scoped, tag = 'input window, operand 1, single buffered']
    #allocation6 [shape = 's32[1]{0}', space=sflag, size = 0x4, scoped, tag = 'scoped memory for tpu_custom_call.1']
    #allocation7 [shape = 'u8[8192]{0}', space=vmem, size = 0x2000, scoped, tag = 'input window, operand 3, single buffered']
    #allocation8 [shape = 'u8[8192]{0}', space=vmem, size = 0x2000, scoped, tag = 'output window, operand 0']
    %10 = vsyncpa [#allocation3], 0
    %s11 = scalar_lea.sflag [#allocation3], 1
    %12 = vsyncpa %s11, 0
    %13 = vsyncpa [#allocation6], 0
    %14 = vsyncpa [#allocation4], 0
    %s15 = scalar_lea.sflag [#allocation4], 1
    %16 = vsyncpa %s15, 0
    loop: start=0, step=1, limit=4
    $region2: #{tpu_custom_call.1} parent=1 // loop_pre_header
      _
    $region3: #{tpu_custom_call.1} parent=1 // loop_header
      %s18 = sphi 0, %s22
      %p19 = scmp.ge.s32.totalorder %s18, 4
      %s28 = sphi 0, %s30
      %s31 = sphi 0, %s28
      %s32 = sphi 0, %s31
      %s48 = sphi 0, %s32
      %s52 = sphi 0, %s52
      %s54 = sphi 0, %s52
      %s55 = sphi 0, %s54
      %s69 = sphi 0, %s55
      %s73 = sphi 0, %s73
      %s75 = sphi 0, %s73
      %s76 = sphi 0, %s75
      %s90 = sphi 0, %s76
      %s94 = sphi 0, %s94
      %s96 = sphi 0, %s94
      %s97 = sphi 0, %s96
      %s111 = sphi 0, %s97
      %s115 = sphi 0, %s115
      %s117 = sphi 0, %s115
      %s118 = sphi 0, %s117
      %s132 = sphi 0, %s118
      %s138 = sphi 0, %s140
      %s141 = sphi 0, %s138
      %s142 = sphi 0, %s141
      %s158 = sphi 0, %s142
    $region4: #{tpu_custom_call.1} parent=1 // loop_header_branch
      %21 = sbr.rel (%p19) target = $region8
    $region5: #{tpu_custom_call.1} parent=1 // loop_body
      %s23 = ssub.s32 %s18, 1
      %s24 = ssub.s32 %s18, 2
      %s25 = sadd.s32 %s18, 1
      %s26 = ssub.s32 %s18, %s25
      %p27 = scmp.eq.s32.totalorder %s26, 0
      %s29 = sadd.s32 %s28, 1
      %s30 = scalar_select %p27, %s28, %s29
      %p33 = pneg %p27
      %p34 = scmp.eq.s32.totalorder %s18, 1
      %p35 = por %p33, %p34
      %p36 = scmp.ne.s32.totalorder %s28, %s31
      %p37 = scmp.eq.s32.totalorder %s18, 0
      %p38 = por %p36, %p37
      %p39 = scmp.ne.s32.totalorder %s28, %s31
      %p40 = scmp.eq.s32.totalorder %s23, 1
      %p41 = por %p39, %p40
      %p42 = scmp.ne.s32.totalorder %s31, %s32
      %p43 = scmp.eq.s32.totalorder %s23, 0
      %p44 = por %p42, %p43
      %p45 = scmp.ne.s32.totalorder %s31, %s32
      %p46 = scmp.eq.s32.totalorder %s24, 1
      %p47 = por %p45, %p46
      %p49 = scmp.ne.s32.totalorder %s32, %s48
      %p50 = scmp.eq.s32.totalorder %s24, 0
      %p51 = por %p49, %p50
      %s53 = sadd.s32 %s52, 1
      %p56 = scmp.eq.s32.totalorder %s18, 1
      %p57 = scmp.ne.s32.totalorder %s52, %s54
      %p58 = scmp.eq.s32.totalorder %s18, 0
      %p59 = por %p57, %p58
      %p60 = scmp.ne.s32.totalorder %s52, %s54
      %p61 = scmp.eq.s32.totalorder %s23, 1
      %p62 = por %p60, %p61
      %p63 = scmp.ne.s32.totalorder %s54, %s55
      %p64 = scmp.eq.s32.totalorder %s23, 0
      %p65 = por %p63, %p64
      %p66 = scmp.ne.s32.totalorder %s54, %s55
      %p67 = scmp.eq.s32.totalorder %s24, 1
      %p68 = por %p66, %p67
      %p70 = scmp.ne.s32.totalorder %s55, %s69
      %p71 = scmp.eq.s32.totalorder %s24, 0
      %p72 = por %p70, %p71
      %s74 = sadd.s32 %s73, 1
      %p77 = scmp.eq.s32.totalorder %s18, 1
      %p78 = scmp.ne.s32.totalorder %s73, %s75
      %p79 = scmp.eq.s32.totalorder %s18, 0
      %p80 = por %p78, %p79
      %p81 = scmp.ne.s32.totalorder %s73, %s75
      %p82 = scmp.eq.s32.totalorder %s23, 1
      %p83 = por %p81, %p82
      %p84 = scmp.ne.s32.totalorder %s75, %s76
      %p85 = scmp.eq.s32.totalorder %s23, 0
      %p86 = por %p84, %p85
      %p87 = scmp.ne.s32.totalorder %s75, %s76
      %p88 = scmp.eq.s32.totalorder %s24, 1
      %p89 = por %p87, %p88
      %p91 = scmp.ne.s32.totalorder %s76, %s90
      %p92 = scmp.eq.s32.totalorder %s24, 0
      %p93 = por %p91, %p92
      %s95 = sadd.s32 %s94, 1
      %p98 = scmp.eq.s32.totalorder %s18, 1
      %p99 = scmp.ne.s32.totalorder %s94, %s96
      %p100 = scmp.eq.s32.totalorder %s18, 0
      %p101 = por %p99, %p100
      %p102 = scmp.ne.s32.totalorder %s94, %s96
      %p103 = scmp.eq.s32.totalorder %s23, 1
      %p104 = por %p102, %p103
      %p105 = scmp.ne.s32.totalorder %s96, %s97
      %p106 = scmp.eq.s32.totalorder %s23, 0
      %p107 = por %p105, %p106
      %p108 = scmp.ne.s32.totalorder %s96, %s97
      %p109 = scmp.eq.s32.totalorder %s24, 1
      %p110 = por %p108, %p109
      %p112 = scmp.ne.s32.totalorder %s97, %s111
      %p113 = scmp.eq.s32.totalorder %s24, 0
      %p114 = por %p112, %p113
      %s116 = sadd.s32 %s115, 1
      %p119 = scmp.eq.s32.totalorder %s18, 1
      %p120 = scmp.ne.s32.totalorder %s115, %s117
      %p121 = scmp.eq.s32.totalorder %s18, 0
      %p122 = por %p120, %p121
      %p123 = scmp.ne.s32.totalorder %s115, %s117
      %p124 = scmp.eq.s32.totalorder %s23, 1
      %p125 = por %p123, %p124
      %p126 = scmp.ne.s32.totalorder %s117, %s118
      %p127 = scmp.eq.s32.totalorder %s23, 0
      %p128 = por %p126, %p127
      %p129 = scmp.ne.s32.totalorder %s117, %s118
      %p130 = scmp.eq.s32.totalorder %s24, 1
      %p131 = por %p129, %p130
      %p133 = scmp.ne.s32.totalorder %s118, %s132
      %p134 = scmp.eq.s32.totalorder %s24, 0
      %p135 = por %p133, %p134
      %s136 = ssub.s32 %s18, %s25
      %p137 = scmp.eq.s32.totalorder %s136, 0
      %s139 = sadd.s32 %s138, 1
      %s140 = scalar_select %p137, %s138, %s139
      %p143 = pneg %p137
      %p144 = scmp.eq.s32.totalorder %s18, 1
      %p145 = por %p143, %p144
      %p146 = scmp.ne.s32.totalorder %s138, %s141
      %p147 = scmp.eq.s32.totalorder %s18, 0
      %p148 = por %p146, %p147
      %p149 = scmp.ne.s32.totalorder %s138, %s141
      %p150 = scmp.eq.s32.totalorder %s23, 1
      %p151 = por %p149, %p150
      %p152 = scmp.ne.s32.totalorder %s141, %s142
      %p153 = scmp.eq.s32.totalorder %s23, 0
      %p154 = por %p152, %p153
      %p155 = scmp.ne.s32.totalorder %s141, %s142
      %p156 = scmp.eq.s32.totalorder %s24, 1
      %p157 = por %p155, %p156
      %p159 = scmp.ne.s32.totalorder %s142, %s158
      %p160 = scmp.eq.s32.totalorder %s24, 0
      %p161 = por %p159, %p160
      %p162 = scmp.le.s32.totalorder 1, %s18
      %p163 = scmp.lt.s32.totalorder %s18, 3
      %p164 = pnand %p162, %p163
      %p165 = pneg %p164
      // Predicated region
      $region9: #{tpu_custom_call.1} parent=5 // pred_check
        _
      $region10: #{tpu_custom_call.1} parent=5 // pred_check_branch
        %167 = sbr.rel (%p164) target = $region12
      $region11: #{tpu_custom_call.1} parent=5 // pred_region
        %s168 = ssub.s32 %s18, 1
        // Predicated region
        $region13: #{tpu_custom_call.1} parent=11 // pred_check
          %p169 = pneg %p65
        $region14: #{tpu_custom_call.1} parent=11 // pred_check_branch
          %171 = sbr.rel (%p169) target = $region16
        $region15: #{tpu_custom_call.1} parent=11 // pred_region
          %173 = vsyncadd [#allocation6], 0
          %s174 = sshll.u32 %s1, 4
          %s175 = int_to_ptr.hbm [resolvable:$true] %s174
          %s176 = sshll.u32 [#allocation5], 4
          %s177 = int_to_ptr.vmem [resolvable:$true] %s176
          %182 = dma.hbm_to_vmem [thread:$0]  %s175, 128, %s177, [#allocation6], 64, 64, 4
        $region16: #{tpu_custom_call.1} parent=11 // pred_fallthru
          _
        // Predicated region
        $region17: #{tpu_custom_call.1} parent=11 // pred_check
          %p183 = pneg %p86
        $region18: #{tpu_custom_call.1} parent=11 // pred_check_branch
          %185 = sbr.rel (%p183) target = $region20
        $region19: #{tpu_custom_call.1} parent=11 // pred_region
          _
        $region20: #{tpu_custom_call.1} parent=11 // pred_fallthru
          _
        // Predicated region
        $region21: #{tpu_custom_call.1} parent=11 // pred_check
          %p186 = pneg %p107
        $region22: #{tpu_custom_call.1} parent=11 // pred_check_branch
          %188 = sbr.rel (%p186) target = $region24
        $region23: #{tpu_custom_call.1} parent=11 // pred_region
          %190 = vsyncadd [#allocation6], 0
          %s191 = sshll.u32 %s3, 4
          %s192 = int_to_ptr.hbm [resolvable:$true] %s191
          %s193 = sshll.u32 [#allocation7], 4
          %s194 = int_to_ptr.vmem [resolvable:$true] %s193
          %199 = dma.hbm_to_vmem [thread:$0]  %s192, 256, %s194, [#allocation6], 64, 64, 4
        $region24: #{tpu_custom_call.1} parent=11 // pred_fallthru
          _
        // Predicated region
        $region25: #{tpu_custom_call.1} parent=11 // pred_check
          %p200 = pneg %p128
        $region26: #{tpu_custom_call.1} parent=11 // pred_check_branch
          %202 = sbr.rel (%p200) target = $region28
        $region27: #{tpu_custom_call.1} parent=11 // pred_region
          _
        $region28: #{tpu_custom_call.1} parent=11 // pred_fallthru
          _
      $region12: #{tpu_custom_call.1} parent=5 // pred_fallthru
        _
      %p203 = scmp.lt.s32.totalorder %s18, 2
      // Predicated region
      $region29: #{tpu_custom_call.1} parent=5 // pred_check
        %p204 = pneg %p203
      $region30: #{tpu_custom_call.1} parent=5 // pred_check_branch
        %206 = sbr.rel (%p204) target = $region32
      $region31: #{tpu_custom_call.1} parent=5 // pred_region
        // Predicated region
        $region33: #{tpu_custom_call.1} parent=31 // pred_check
          %p207 = pneg %p38
        $region34: #{tpu_custom_call.1} parent=31 // pred_check_branch
          %209 = sbr.rel (%p207) target = $region36
        $region35: #{tpu_custom_call.1} parent=31 // pred_region
          %s210 = sand.u32 %s28, 1
          %s211 = scalar_lea.sflag [#allocation3], %s210
          %s212 = sand.u32 %s28, 1
          %s213 = smul.addr %s212, 8
          %s214 = scalar_lea.vmem [#allocation2], %s213
          %216 = vsyncadd %s211, 0
          %s217 = smul.addr %s18, 8
          %s218 = scalar_lea.hbm %s0, %s217
          %s220 = sshll.u32 %s218, 4
          %s221 = int_to_ptr.hbm [resolvable:$true] %s220
          %s222 = sshll.u32 %s214, 4
          %s223 = int_to_ptr.vmem [resolvable:$true] %s222
          %225 = dma.hbm_to_vmem [thread:$0]  %s221, 128, %s223, %s211
        $region36: #{tpu_custom_call.1} parent=31 // pred_fallthru
          _
      $region32: #{tpu_custom_call.1} parent=5 // pred_fallthru
        _
      %p226 = scmp.le.s32.totalorder 1, %s18
      %p227 = scmp.lt.s32.totalorder %s18, 3
      %p228 = pnand %p226, %p227
      %p229 = pneg %p228
      // Predicated region
      $region37: #{tpu_custom_call.1} parent=5 // pred_check
        _
      $region38: #{tpu_custom_call.1} parent=5 // pred_check_branch
        %231 = sbr.rel (%p228) target = $region40
      $region39: #{tpu_custom_call.1} parent=5 // pred_region
        %s232 = ssub.s32 %s18, 1
        %s233 = sand.u32 %s31, 1
        %s234 = scalar_lea.sflag [#allocation3], %s233
        %s235 = sand.u32 %s31, 1
        %s236 = smul.addr %s235, 8
        %s237 = scalar_lea.vmem [#allocation2], %s236
        // Predicated region
        $region41: #{tpu_custom_call.1} parent=39 // pred_check
          %p238 = pneg %p44
        $region42: #{tpu_custom_call.1} parent=39 // pred_check_branch
          %240 = sbr.rel (%p238) target = $region44
        $region43: #{tpu_custom_call.1} parent=39 // pred_region
          %242 = dma.done %s234, 128
        $region44: #{tpu_custom_call.1} parent=39 // pred_fallthru
          _
        // Predicated region
        $region45: #{tpu_custom_call.1} parent=39 // pred_check
          %p243 = pneg %p65
        $region46: #{tpu_custom_call.1} parent=39 // pred_check_branch
          %245 = sbr.rel (%p243) target = $region48
        $region47: #{tpu_custom_call.1} parent=39 // pred_region
          %247 = dma.done [#allocation6], 128
        $region48: #{tpu_custom_call.1} parent=39 // pred_fallthru
          _
        // Predicated region
        $region49: #{tpu_custom_call.1} parent=39 // pred_check
          %p248 = pneg %p107
        $region50: #{tpu_custom_call.1} parent=39 // pred_check_branch
          %250 = sbr.rel (%p248) target = $region52
        $region51: #{tpu_custom_call.1} parent=39 // pred_region
          %252 = dma.done [#allocation6], 256
        $region52: #{tpu_custom_call.1} parent=39 // pred_fallthru
          _
        %s253 = sand.u32 %s31, 1
        %s254 = scalar_lea.sflag [#allocation3], %s253
        %s255 = sand.u32 %s31, 1
        %s256 = smul.addr %s255, 8
        %s257 = scalar_lea.vmem [#allocation2], %s256
        %p258 = pneg %p44
        %p259 = pneg %p41
        %p260 = pneg %p65
        %p261 = pneg %p62
        %p262 = pneg %p86
        %p263 = pneg %p83
        %p264 = pneg %p107
        %p265 = pneg %p104
        %p266 = pneg %p128
        %p267 = pneg %p125
        %p268 = pneg %p154
        %p269 = pneg %p151
        %s270 = sand.u32 %s141, 1
        %s271 = scalar_lea.sflag [#allocation4], %s270
        %s272 = sand.u32 %s141, 1
        %s273 = smul.addr %s272, 8
        %s274 = scalar_lea.vmem [#allocation8], %s273
        %v276 = vld [vmem:[%s237] sm:$0xff]
        %v277 = vpack.c.bf16 %v276, %v276
        %v278 = vld [vmem:[#allocation5] sm:$0xf]
        %v279 = vld [vmem:[#allocation5 + $0x4] sm:$0xf]
        %v280 = vld [vmem:[%s2] sm:$0x1]
        %v282 = vperm.slane %v280, 0
        %v286 = vunpack.c.l.b16 %v278
        %v287 = vunpack.c.l.b16 %v279
        %v288 = vpack.c.b16 %v287, %v286
        %vm290 = vcmask 130048
        %v292 = vsel %vm290, %v277, 0
        %294 = vmatpush.bf16.msra.mxu0 0
        %295 = vmatpush.bf16.msra.mxu0 0
        %296 = vmatpush.bf16.msra.mxu0 0
        %297 = vmatpush.bf16.msra.mxu0 0
        %298 = vmatpush.bf16.msra.mxu0 0
        %299 = vmatpush.bf16.msra.mxu0 0
        %300 = vmatpush.bf16.msra.mxu0 0
        %301 = vmatpush.bf16.msra.mxu0 %v288
        %302 = vmatmul.bf16.gmra.mxu0 %v292
        %v303 = vpop.f32.mrf.mxu0
        %v304 = vadd.f32 %v282, %v303
        %v305 = vpop.f32.mrf.mxu0
        %306 = vdwg.mxu0
        %308 = vrot.lane.b32.xlu0 %v304, 120
        %v309 = vpop.permute.xlu0 %308
        %311 = vrot.lane.b32.xlu0 %v304, 112
        %v312 = vpop.permute.xlu0 %311
        %314 = vrot.lane.b32.xlu0 %v304, 104
        %v315 = vpop.permute.xlu0 %314
        %v317 = vpack.c.bf16 %v304, %v304
        %v318 = vpack.c.bf16 %v309, %v309
        %v319 = vpack.c.bf16 %v312, %v312
        %v320 = vpack.c.bf16 %v315, %v315
        %v322 = vunpack.c.l.b16 %v317
        %v323 = vpack.c.b16 %v322, %v322
        %324 = vrot.lane.b32.xlu0 %v323, 96
        %v325 = vpop.permute.xlu0 %324
        %vm326 = vcmask 64512
        %v328 = vsel %vm326, %v317, 0
        %v331 = vsel %vm326, %v325, 0
        %333 = vmatpush.bf16.xpose.msra.mxu0 0
        %334 = vmatpush.bf16.xpose.msra.mxu0 0
        %335 = vmatpush.bf16.xpose.msra.mxu0 0
        %336 = vmatpush.bf16.xpose.msra.mxu0 0
        %337 = vmatpush.bf16.xpose.msra.mxu0 0
        %338 = vmatpush.bf16.xpose.msra.mxu0 0
        %339 = vmatpush.bf16.xpose.msra.mxu0 0
        %340 = vmatpush.bf16.xpose.msra.mxu0 %v331
        %341 = vmatmul.bf16.gmra.mxu0 %v328
        %v342 = vpop.f32.mrf.mxu0
        %v343 = vadd.f32 0.0, %v342
        %v344 = vpop.f32.mrf.mxu0
        %345 = vdwg.mxu0
        %v347 = vunpack.c.l.b16 %v318
        %v348 = vpack.c.b16 %v347, %v347
        %349 = vrot.lane.b32.xlu0 %v348, 96
        %v350 = vpop.permute.xlu0 %349
        %v352 = vsel %vm326, %v318, 0
        %v355 = vsel %vm326, %v350, 0
        %357 = vmatpush.bf16.xpose.msra.mxu0 0
        %358 = vmatpush.bf16.xpose.msra.mxu0 0
        %359 = vmatpush.bf16.xpose.msra.mxu0 0
        %360 = vmatpush.bf16.xpose.msra.mxu0 0
        %361 = vmatpush.bf16.xpose.msra.mxu0 0
        %362 = vmatpush.bf16.xpose.msra.mxu0 0
        %363 = vmatpush.bf16.xpose.msra.mxu0 0
        %364 = vmatpush.bf16.xpose.msra.mxu0 %v355
        %365 = vmatmul.bf16.gmra.mxu0 %v352
        %v366 = vpop.f32.mrf.mxu0
        %v367 = vadd.f32 0.0, %v366
        %v368 = vpop.f32.mrf.mxu0
        %369 = vdwg.mxu0
        %v371 = vunpack.c.l.b16 %v319
        %v372 = vpack.c.b16 %v371, %v371
        %373 = vrot.lane.b32.xlu0 %v372, 96
        %v374 = vpop.permute.xlu0 %373
        %v376 = vsel %vm326, %v319, 0
        %v379 = vsel %vm326, %v374, 0
        %381 = vmatpush.bf16.xpose.msra.mxu0 0
        %382 = vmatpush.bf16.xpose.msra.mxu0 0
        %383 = vmatpush.bf16.xpose.msra.mxu0 0
        %384 = vmatpush.bf16.xpose.msra.mxu0 0
        %385 = vmatpush.bf16.xpose.msra.mxu0 0
        %386 = vmatpush.bf16.xpose.msra.mxu0 0
        %387 = vmatpush.bf16.xpose.msra.mxu0 0
        %388 = vmatpush.bf16.xpose.msra.mxu0 %v379
        %389 = vmatmul.bf16.gmra.mxu0 %v376
        %v390 = vpop.f32.mrf.mxu0
        %v391 = vadd.f32 0.0, %v390
        %v392 = vpop.f32.mrf.mxu0
        %393 = vdwg.mxu0
        %v395 = vunpack.c.l.b16 %v320
        %v396 = vpack.c.b16 %v395, %v395
        %397 = vrot.lane.b32.xlu0 %v396, 96
        %v398 = vpop.permute.xlu0 %397
        %v400 = vsel %vm326, %v320, 0
        %v403 = vsel %vm326, %v398, 0
        %405 = vmatpush.bf16.xpose.msra.mxu0 0
        %406 = vmatpush.bf16.xpose.msra.mxu0 0
        %407 = vmatpush.bf16.xpose.msra.mxu0 0
        %408 = vmatpush.bf16.xpose.msra.mxu0 0
        %409 = vmatpush.bf16.xpose.msra.mxu0 0
        %410 = vmatpush.bf16.xpose.msra.mxu0 0
        %411 = vmatpush.bf16.xpose.msra.mxu0 0
        %412 = vmatpush.bf16.xpose.msra.mxu0 %v403
        %413 = vmatmul.bf16.gmra.mxu0 %v400
        %v414 = vpop.f32.mrf.mxu0
        %v415 = vadd.f32 0.0, %v414
        %v416 = vpop.f32.mrf.mxu0
        %417 = vdwg.mxu0
        %v418 = vsel %vm326, %v343, -inf
        %419 = vmax.xlane.f32.xlu0 %v418
        %v420 = vpop.xlane.xlu0 %419
        %v421 = vsel %vm326, %v367, -inf
        %422 = vmax.xlane.f32.xlu0 %v421
        %v423 = vpop.xlane.xlu0 %422
        %v424 = vsel %vm326, %v391, -inf
        %425 = vmax.xlane.f32.xlu0 %v424
        %v426 = vpop.xlane.xlu0 %425
        %v427 = vsel %vm326, %v415, -inf
        %428 = vmax.xlane.f32.xlu0 %v427
        %v429 = vpop.xlane.xlu0 %428
        %v430 = vsub.f32 %v343, %v420
        %v431 = vsub.f32 %v367, %v423
        %v432 = vsub.f32 %v391, %v426
        %v433 = vsub.f32 %v415, %v429
        %v434 = vmul.f32 %v430, 1.442695
        %v435 = vpow.pop %v434
        %v436 = vmul.f32 %v431, 1.442695
        %v437 = vpow.pop %v436
        %v438 = vmul.f32 %v432, 1.442695
        %v439 = vpow.pop %v438
        %v440 = vmul.f32 %v433, 1.442695
        %v441 = vpow.pop %v440
        %v442 = vsel %vm326, %v435, 0.0
        %443 = vadd.xlane.f32.xlu0 %v442
        %v444 = vpop.xlane.xlu0 %443
        %v445 = vsel %vm326, %v437, 0.0
        %446 = vadd.xlane.f32.xlu0 %v445
        %v447 = vpop.xlane.xlu0 %446
        %v448 = vsel %vm326, %v439, 0.0
        %449 = vadd.xlane.f32.xlu0 %v448
        %v450 = vpop.xlane.xlu0 %449
        %v451 = vsel %vm326, %v441, 0.0
        %452 = vadd.xlane.f32.xlu0 %v451
        %v453 = vpop.xlane.xlu0 %452
        %v454 = vrcp.pop %v444
        %v455 = vrcp.pop %v447
        %v456 = vrcp.pop %v450
        %v457 = vrcp.pop %v453
        %v458 = vmul.f32 %v435, %v454
        %v459 = vmul.f32 %v437, %v455
        %v460 = vmul.f32 %v439, %v456
        %v461 = vmul.f32 %v441, %v457
        %v462 = vpack.c.bf16 %v458, %v458
        %v463 = vpack.c.bf16 %v459, %v459
        %v464 = vpack.c.bf16 %v460, %v460
        %v465 = vpack.c.bf16 %v461, %v461
        %466 = vrot.lane.b32.xlu0 %v323, 64
        %v467 = vpop.permute.xlu0 %466
        %v469 = vsel %vm326, %v462, 0
        %vm471 = vcmask 1043456
        %v473 = vsel %vm471, %v467, 0
        %475 = vmatpush.bf16.msra.mxu0 0
        %476 = vmatpush.bf16.msra.mxu0 0
        %477 = vmatpush.bf16.msra.mxu0 0
        %478 = vmatpush.bf16.msra.mxu0 0
        %479 = vmatpush.bf16.msra.mxu0 0
        %480 = vmatpush.bf16.msra.mxu0 0
        %481 = vmatpush.bf16.msra.mxu0 0
        %482 = vmatpush.bf16.msra.mxu0 %v473
        %483 = vmatmul.bf16.gmra.mxu0 %v469
        %v484 = vpop.f32.mrf.mxu0
        %v485 = vadd.f32 0.0, %v484
        %v486 = vpop.f32.mrf.mxu0
        %487 = vdwg.mxu0
        %488 = vrot.lane.b32.xlu0 %v348, 64
        %v489 = vpop.permute.xlu0 %488
        %v491 = vsel %vm326, %v463, 0
        %v494 = vsel %vm471, %v489, 0
        %496 = vmatpush.bf16.msra.mxu0 0
        %497 = vmatpush.bf16.msra.mxu0 0
        %498 = vmatpush.bf16.msra.mxu0 0
        %499 = vmatpush.bf16.msra.mxu0 0
        %500 = vmatpush.bf16.msra.mxu0 0
        %501 = vmatpush.bf16.msra.mxu0 0
        %502 = vmatpush.bf16.msra.mxu0 0
        %503 = vmatpush.bf16.msra.mxu0 %v494
        %504 = vmatmul.bf16.gmra.mxu0 %v491
        %v505 = vpop.f32.mrf.mxu0
        %v506 = vadd.f32 0.0, %v505
        %v507 = vpop.f32.mrf.mxu0
        %508 = vdwg.mxu0
        %509 = vrot.lane.b32.xlu0 %v372, 64
        %v510 = vpop.permute.xlu0 %509
        %v512 = vsel %vm326, %v464, 0
        %v515 = vsel %vm471, %v510, 0
        %517 = vmatpush.bf16.msra.mxu0 0
        %518 = vmatpush.bf16.msra.mxu0 0
        %519 = vmatpush.bf16.msra.mxu0 0
        %520 = vmatpush.bf16.msra.mxu0 0
        %521 = vmatpush.bf16.msra.mxu0 0
        %522 = vmatpush.bf16.msra.mxu0 0
        %523 = vmatpush.bf16.msra.mxu0 0
        %524 = vmatpush.bf16.msra.mxu0 %v515
        %525 = vmatmul.bf16.gmra.mxu0 %v512
        %v526 = vpop.f32.mrf.mxu0
        %v527 = vadd.f32 0.0, %v526
        %v528 = vpop.f32.mrf.mxu0
        %529 = vdwg.mxu0
        %530 = vrot.lane.b32.xlu0 %v396, 64
        %v531 = vpop.permute.xlu0 %530
        %v533 = vsel %vm326, %v465, 0
        %v536 = vsel %vm471, %v531, 0
        %538 = vmatpush.bf16.msra.mxu0 0
        %539 = vmatpush.bf16.msra.mxu0 0
        %540 = vmatpush.bf16.msra.mxu0 0
        %541 = vmatpush.bf16.msra.mxu0 0
        %542 = vmatpush.bf16.msra.mxu0 0
        %543 = vmatpush.bf16.msra.mxu0 0
        %544 = vmatpush.bf16.msra.mxu0 0
        %545 = vmatpush.bf16.msra.mxu0 %v536
        %546 = vmatmul.bf16.gmra.mxu0 %v533
        %v547 = vpop.f32.mrf.mxu0
        %v548 = vadd.f32 0.0, %v547
        %v549 = vpop.f32.mrf.mxu0
        %550 = vdwg.mxu0
        %v551 = vadd.f32 %v304, %v485
        %v552 = vadd.f32 %v309, %v506
        %v553 = vadd.f32 %v312, %v527
        %v554 = vadd.f32 %v315, %v548
        %556 = vrot.lane.b32.xlu0 %v552, 8
        %v557 = vpop.permute.xlu0 %556
        %560 = vrot.lane.b32.xlu0 %v553, 16
        %v561 = vpop.permute.xlu0 %560
        %564 = vrot.lane.b32.xlu0 %v554, 24
        %v565 = vpop.permute.xlu0 %564
        %v567 = vsel %vm326, %v551, %v557
        %v568 = vsel %vm290, %v567, %v561
        %vm569 = vcmask 195584
        %v570 = vsel %vm569, %v568, %v565
        %v571 = vpack.c.bf16 %v570, %v570
        %v572 = vld [vmem:[#allocation7] sm:$0xf]
        %v573 = vld [vmem:[#allocation7 + $0x4] sm:$0xf]
        %v574 = vld [vmem:[#allocation7 + $0x8] sm:$0xf]
        %v575 = vld [vmem:[#allocation7 + $0xc] sm:$0xf]
        %v576 = vld [vmem:[%s4] sm:$0x1]
        %v578 = vperm.slane %v576, 0
        %v584 = vunpack.c.l.b16 %v572
        %v585 = vunpack.c.l.b16 %v573
        %v586 = vunpack.c.l.b16 %v574
        %v587 = vunpack.c.l.b16 %v575
        %v588 = vpack.c.b16 %v585, %v584
        %v589 = vpack.c.b16 %v587, %v586
        %vm592 = vcmask 261120
        %v594 = vsel %vm592, %v571, 0
        %596 = vmatpush.bf16.msra.mxu0 0
        %597 = vmatpush.bf16.msra.mxu0 0
        %598 = vmatpush.bf16.msra.mxu0 0
        %599 = vmatpush.bf16.msra.mxu0 0
        %600 = vmatpush.bf16.msra.mxu0 0
        %601 = vmatpush.bf16.msra.mxu0 0
        %602 = vmatpush.bf16.msra.mxu0 %v589
        %603 = vmatpush.bf16.msra.mxu0 %v588
        %604 = vmatmul.bf16.gmra.mxu0 %v594
        %v605 = vpop.f32.mrf.mxu0
        %v606 = vadd.f32 %v578, %v605
        %v607 = vpop.f32.mrf.mxu0
        %608 = vdwg.mxu0
        %v609 = vmax.f32 %v606, 0.0
        %v610 = vadd.f32 %v570, %v609
        %611 = vst.msk [vmem:[%s274] sm:$0xff] %vm592, %v610
        %s612 = sand.u32 %s141, 1
        %s613 = scalar_lea.sflag [#allocation4], %s612
        %s614 = sand.u32 %s141, 1
        %s615 = smul.addr %s614, 8
        %s616 = scalar_lea.vmem [#allocation8], %s615
        // Predicated region
        $region53: #{tpu_custom_call.1} parent=39 // pred_check
          %p617 = pneg %p151
        $region54: #{tpu_custom_call.1} parent=39 // pred_check_branch
          %619 = sbr.rel (%p617) target = $region56
        $region55: #{tpu_custom_call.1} parent=39 // pred_region
          %621 = vsyncadd %s613, 0
          %s622 = smul.addr %s23, 8
          %s623 = scalar_lea.hbm %s5, %s622
          %s625 = sshll.u32 %s616, 4
          %s626 = int_to_ptr.vmem [resolvable:$true] %s625
          %s627 = sshll.u32 %s623, 4
          %s628 = int_to_ptr.hbm [resolvable:$true] %s627
          %630 = dma.vmem_to_hbm [thread:$0]  %s626, 128, %s628, %s613
        $region56: #{tpu_custom_call.1} parent=39 // pred_fallthru
          _
      $region40: #{tpu_custom_call.1} parent=5 // pred_fallthru
        _
      %p631 = scmp.le.s32.totalorder 2, %s18
      // Predicated region
      $region57: #{tpu_custom_call.1} parent=5 // pred_check
        %p632 = pneg %p631
      $region58: #{tpu_custom_call.1} parent=5 // pred_check_branch
        %634 = sbr.rel (%p632) target = $region60
      $region59: #{tpu_custom_call.1} parent=5 // pred_region
        %s635 = ssub.s32 %s18, 2
        // Predicated region
        $region61: #{tpu_custom_call.1} parent=59 // pred_check
          %p636 = pneg %p157
        $region62: #{tpu_custom_call.1} parent=59 // pred_check_branch
          %638 = sbr.rel (%p636) target = $region64
        $region63: #{tpu_custom_call.1} parent=59 // pred_region
          %s639 = sand.u32 %s142, 1
          %s640 = scalar_lea.sflag [#allocation4], %s639
          %s641 = sand.u32 %s142, 1
          %s642 = smul.addr %s641, 8
          %s643 = scalar_lea.vmem [#allocation8], %s642
          %645 = dma.done %s640, 128
        $region64: #{tpu_custom_call.1} parent=59 // pred_fallthru
          _
      $region60: #{tpu_custom_call.1} parent=5 // pred_fallthru
        _
    $region6: #{tpu_custom_call.1} parent=1 // loop_footer
      %s22 = sadd.s32 1, %s18
    $region7: #{tpu_custom_call.1} parent=1 // loop_footer_branch
      %17 = sbr.rel target = $region3
    $region8: #{tpu_custom_call.1} parent=1 // loop_exit
      _
    %646 = vsyncpa [#allocation3], 1
    %s647 = scalar_lea.sflag [#allocation3], 1
    %648 = vsyncpa %s647, 1
    %649 = vsyncpa [#allocation6], 1
    %650 = vsyncpa [#allocation4], 1
    %s651 = scalar_lea.sflag [#allocation4], 1
    %652 = vsyncpa %s651, 1

// kernel: tpu_custom_call.1
$region0: #{tpu_custom_call.1}
  #allocation0 [shape = 'u32[]', space=smem, size = 0x4, offset = 0x4, fixed_abs, tag = 'smem constant byte address 0x4 - core index']
  #allocation1 [shape = 'u32[72,128]{1,0:T(1,128)}', space=vmem, size = 0x9000, scoped, tag = 'internal scratch']
  %s0 = inlined_call_operand.hbm [shape: f32[2,8,16], index: 0, kind: input, shape index: {}]
  %s1 = inlined_call_operand.hbm [shape: bf16[16,96], index: 1, kind: input, shape index: {}]
  %s2 = inlined_call_operand.vmem [shape: f32[1,96], index: 2, kind: input, shape index: {}]
  %s3 = inlined_call_operand.hbm [shape: bf16[32,32], index: 3, kind: input, shape index: {}]
  %s4 = inlined_call_operand.vmem [shape: f32[1,32], index: 4, kind: input, shape index: {}]
  %s5 = inlined_call_operand.hbm [shape: f32[2,8,32], index: 5, kind: output, shape index: {}]
  %s6 = sld [smem:[#allocation0]]
  $region65: #{tpu_custom_call.1} parent=0
    _
  %s8 = ssub.s32 1, %s6
  %s9 = scalar_select 0, %s8, %s6
  $region1: #{tpu_custom_call.1} parent=0
    #allocation2 [shape = 'u8[8192]{0}', space=vmem, size = 0x2000, scoped, tag = 'input window, operand 0']
    #allocation3 [shape = 's32[2]{0}', space=sflag, size = 0x8, scoped, tag = 'scoped memory for tpu_custom_call.1']
    #allocation4 [shape = 's32[2]{0}', space=sflag, size = 0x8, scoped, tag = 'scoped memory for tpu_custom_call.1']
    #allocation5 [shape = 'u8[4096]{0}', space=vmem, size = 0x1000, scoped, tag = 'input window, operand 1, single buffered']
    #allocation6 [shape = 's32[1]{0}', space=sflag, size = 0x4, scoped, tag = 'scoped memory for tpu_custom_call.1']
    #allocation7 [shape = 'u8[8192]{0}', space=vmem, size = 0x2000, scoped, tag = 'input window, operand 3, single buffered']
    #allocation8 [shape = 'u8[8192]{0}', space=vmem, size = 0x2000, scoped, tag = 'output window, operand 0']
    %10 = vsyncpa [#allocation3], 0
    %s11 = scalar_lea.sflag [#allocation3], 1
    %12 = vsyncpa %s11, 0
    %13 = vsyncpa [#allocation6], 0
    %14 = vsyncpa [#allocation4], 0
    %s15 = scalar_lea.sflag [#allocation4], 1
    %16 = vsyncpa %s15, 0
    loop: start=0, step=1, limit=4
    $region2: #{tpu_custom_call.1} parent=1 // loop_pre_header
      _
    $region3: #{tpu_custom_call.1} parent=1 // loop_header
      %s18 = sphi 0, %s22
      %p19 = scmp.ge.s32.totalorder %s18, 4
      %s28 = sphi 0, %s30
      %s31 = sphi 0, %s28
      %s32 = sphi 0, %s31
      %s48 = sphi 0, %s32
      %s52 = sphi 0, %s52
      %s54 = sphi 0, %s52
      %s55 = sphi 0, %s54
      %s69 = sphi 0, %s55
      %s73 = sphi 0, %s73
      %s75 = sphi 0, %s73
      %s76 = sphi 0, %s75
      %s90 = sphi 0, %s76
      %s94 = sphi 0, %s94
      %s96 = sphi 0, %s94
      %s97 = sphi 0, %s96
      %s111 = sphi 0, %s97
      %s115 = sphi 0, %s115
      %s117 = sphi 0, %s115
      %s118 = sphi 0, %s117
      %s132 = sphi 0, %s118
      %s138 = sphi 0, %s140
      %s141 = sphi 0, %s138
      %s142 = sphi 0, %s141
      %s158 = sphi 0, %s142
    $region4: #{tpu_custom_call.1} parent=1 // loop_header_branch
      %21 = sbr.rel (%p19) target = $region8
    $region5: #{tpu_custom_call.1} parent=1 // loop_body
      %s23 = ssub.s32 %s18, 1
      %s24 = ssub.s32 %s18, 2
      %s25 = sadd.s32 %s18, 1
      %s26 = ssub.s32 %s18, %s25
      %p27 = scmp.eq.s32.totalorder %s26, 0
      %s29 = sadd.s32 %s28, 1
      %s30 = scalar_select %p27, %s28, %s29
      %p33 = pneg %p27
      %p34 = scmp.eq.s32.totalorder %s18, 1
      %p35 = por %p33, %p34
      %p36 = scmp.ne.s32.totalorder %s28, %s31
      %p37 = scmp.eq.s32.totalorder %s18, 0
      %p38 = por %p36, %p37
      %p39 = scmp.ne.s32.totalorder %s28, %s31
      %p40 = scmp.eq.s32.totalorder %s23, 1
      %p41 = por %p39, %p40
      %p42 = scmp.ne.s32.totalorder %s31, %s32
      %p43 = scmp.eq.s32.totalorder %s23, 0
      %p44 = por %p42, %p43
      %p45 = scmp.ne.s32.totalorder %s31, %s32
      %p46 = scmp.eq.s32.totalorder %s24, 1
      %p47 = por %p45, %p46
      %p49 = scmp.ne.s32.totalorder %s32, %s48
      %p50 = scmp.eq.s32.totalorder %s24, 0
      %p51 = por %p49, %p50
      %s53 = sadd.s32 %s52, 1
      %p56 = scmp.eq.s32.totalorder %s18, 1
      %p57 = scmp.ne.s32.totalorder %s52, %s54
      %p58 = scmp.eq.s32.totalorder %s18, 0
      %p59 = por %p57, %p58
      %p60 = scmp.ne.s32.totalorder %s52, %s54
      %p61 = scmp.eq.s32.totalorder %s23, 1
      %p62 = por %p60, %p61
      %p63 = scmp.ne.s32.totalorder %s54, %s55
      %p64 = scmp.eq.s32.totalorder %s23, 0
      %p65 = por %p63, %p64
      %p66 = scmp.ne.s32.totalorder %s54, %s55
      %p67 = scmp.eq.s32.totalorder %s24, 1
      %p68 = por %p66, %p67
      %p70 = scmp.ne.s32.totalorder %s55, %s69
      %p71 = scmp.eq.s32.totalorder %s24, 0
      %p72 = por %p70, %p71
      %s74 = sadd.s32 %s73, 1
      %p77 = scmp.eq.s32.totalorder %s18, 1
      %p78 = scmp.ne.s32.totalorder %s73, %s75
      %p79 = scmp.eq.s32.totalorder %s18, 0
      %p80 = por %p78, %p79
      %p81 = scmp.ne.s32.totalorder %s73, %s75
      %p82 = scmp.eq.s32.totalorder %s23, 1
      %p83 = por %p81, %p82
      %p84 = scmp.ne.s32.totalorder %s75, %s76
      %p85 = scmp.eq.s32.totalorder %s23, 0
      %p86 = por %p84, %p85
      %p87 = scmp.ne.s32.totalorder %s75, %s76
      %p88 = scmp.eq.s32.totalorder %s24, 1
      %p89 = por %p87, %p88
      %p91 = scmp.ne.s32.totalorder %s76, %s90
      %p92 = scmp.eq.s32.totalorder %s24, 0
      %p93 = por %p91, %p92
      %s95 = sadd.s32 %s94, 1
      %p98 = scmp.eq.s32.totalorder %s18, 1
      %p99 = scmp.ne.s32.totalorder %s94, %s96
      %p100 = scmp.eq.s32.totalorder %s18, 0
      %p101 = por %p99, %p100
      %p102 = scmp.ne.s32.totalorder %s94, %s96
      %p103 = scmp.eq.s32.totalorder %s23, 1
      %p104 = por %p102, %p103
      %p105 = scmp.ne.s32.totalorder %s96, %s97
      %p106 = scmp.eq.s32.totalorder %s23, 0
      %p107 = por %p105, %p106
      %p108 = scmp.ne.s32.totalorder %s96, %s97
      %p109 = scmp.eq.s32.totalorder %s24, 1
      %p110 = por %p108, %p109
      %p112 = scmp.ne.s32.totalorder %s97, %s111
      %p113 = scmp.eq.s32.totalorder %s24, 0
      %p114 = por %p112, %p113
      %s116 = sadd.s32 %s115, 1
      %p119 = scmp.eq.s32.totalorder %s18, 1
      %p120 = scmp.ne.s32.totalorder %s115, %s117
      %p121 = scmp.eq.s32.totalorder %s18, 0
      %p122 = por %p120, %p121
      %p123 = scmp.ne.s32.totalorder %s115, %s117
      %p124 = scmp.eq.s32.totalorder %s23, 1
      %p125 = por %p123, %p124
      %p126 = scmp.ne.s32.totalorder %s117, %s118
      %p127 = scmp.eq.s32.totalorder %s23, 0
      %p128 = por %p126, %p127
      %p129 = scmp.ne.s32.totalorder %s117, %s118
      %p130 = scmp.eq.s32.totalorder %s24, 1
      %p131 = por %p129, %p130
      %p133 = scmp.ne.s32.totalorder %s118, %s132
      %p134 = scmp.eq.s32.totalorder %s24, 0
      %p135 = por %p133, %p134
      %s136 = ssub.s32 %s18, %s25
      %p137 = scmp.eq.s32.totalorder %s136, 0
      %s139 = sadd.s32 %s138, 1
      %s140 = scalar_select %p137, %s138, %s139
      %p143 = pneg %p137
      %p144 = scmp.eq.s32.totalorder %s18, 1
      %p145 = por %p143, %p144
      %p146 = scmp.ne.s32.totalorder %s138, %s141
      %p147 = scmp.eq.s32.totalorder %s18, 0
      %p148 = por %p146, %p147
      %p149 = scmp.ne.s32.totalorder %s138, %s141
      %p150 = scmp.eq.s32.totalorder %s23, 1
      %p151 = por %p149, %p150
      %p152 = scmp.ne.s32.totalorder %s141, %s142
      %p153 = scmp.eq.s32.totalorder %s23, 0
      %p154 = por %p152, %p153
      %p155 = scmp.ne.s32.totalorder %s141, %s142
      %p156 = scmp.eq.s32.totalorder %s24, 1
      %p157 = por %p155, %p156
      %p159 = scmp.ne.s32.totalorder %s142, %s158
      %p160 = scmp.eq.s32.totalorder %s24, 0
      %p161 = por %p159, %p160
      %p162 = scmp.le.s32.totalorder 1, %s18
      %p163 = scmp.lt.s32.totalorder %s18, 3
      %p164 = pnand %p162, %p163
      %p165 = pneg %p164
      // Predicated region
      $region9: #{tpu_custom_call.1} parent=5 // pred_check
        _
      $region10: #{tpu_custom_call.1} parent=5 // pred_check_branch
        %167 = sbr.rel (%p164) target = $region12
      $region11: #{tpu_custom_call.1} parent=5 // pred_region
        %s168 = ssub.s32 %s18, 1
        // Predicated region
        $region13: #{tpu_custom_call.1} parent=11 // pred_check
          %p169 = pneg %p65
        $region14: #{tpu_custom_call.1} parent=11 // pred_check_branch
          %171 = sbr.rel (%p169) target = $region16
        $region15: #{tpu_custom_call.1} parent=11 // pred_region
          %173 = vsyncadd [#allocation6], 0
          %s174 = sshll.u32 %s1, 4
          %s175 = int_to_ptr.hbm [resolvable:$true] %s174
          %s176 = sshll.u32 [#allocation5], 4
          %s177 = int_to_ptr.vmem [resolvable:$true] %s176
          %182 = dma.hbm_to_vmem [thread:$0]  %s175, 128, %s177, [#allocation6], 64, 64, 4
        $region16: #{tpu_custom_call.1} parent=11 // pred_fallthru
          _
        // Predicated region
        $region17: #{tpu_custom_call.1} parent=11 // pred_check
          %p183 = pneg %p86
        $region18: #{tpu_custom_call.1} parent=11 // pred_check_branch
          %185 = sbr.rel (%p183) target = $region20
        $region19: #{tpu_custom_call.1} parent=11 // pred_region
          _
        $region20: #{tpu_custom_call.1} parent=11 // pred_fallthru
          _
        // Predicated region
        $region21: #{tpu_custom_call.1} parent=11 // pred_check
          %p186 = pneg %p107
        $region22: #{tpu_custom_call.1} parent=11 // pred_check_branch
          %188 = sbr.rel (%p186) target = $region24
        $region23: #{tpu_custom_call.1} parent=11 // pred_region
          %190 = vsyncadd [#allocation6], 0
          %s191 = sshll.u32 %s3, 4
          %s192 = int_to_ptr.hbm [resolvable:$true] %s191
          %s193 = sshll.u32 [#allocation7], 4
          %s194 = int_to_ptr.vmem [resolvable:$true] %s193
          %199 = dma.hbm_to_vmem [thread:$0]  %s192, 256, %s194, [#allocation6], 64, 64, 4
        $region24: #{tpu_custom_call.1} parent=11 // pred_fallthru
          _
        // Predicated region
        $region25: #{tpu_custom_call.1} parent=11 // pred_check
          %p200 = pneg %p128
        $region26: #{tpu_custom_call.1} parent=11 // pred_check_branch
          %202 = sbr.rel (%p200) target = $region28
        $region27: #{tpu_custom_call.1} parent=11 // pred_region
          _
        $region28: #{tpu_custom_call.1} parent=11 // pred_fallthru
          _
      $region12: #{tpu_custom_call.1} parent=5 // pred_fallthru
        _
      %p203 = scmp.lt.s32.totalorder %s18, 2
      // Predicated region
      $region29: #{tpu_custom_call.1} parent=5 // pred_check
        %p204 = pneg %p203
      $region30: #{tpu_custom_call.1} parent=5 // pred_check_branch
        %206 = sbr.rel (%p204) target = $region32
      $region31: #{tpu_custom_call.1} parent=5 // pred_region
        // Predicated region
        $region33: #{tpu_custom_call.1} parent=31 // pred_check
          %p207 = pneg %p38
        $region34: #{tpu_custom_call.1} parent=31 // pred_check_branch
          %209 = sbr.rel (%p207) target = $region36
        $region35: #{tpu_custom_call.1} parent=31 // pred_region
          %s210 = sand.u32 %s28, 1
          %s211 = scalar_lea.sflag [#allocation3], %s210
          %s212 = sand.u32 %s28, 1
          %s213 = smul.addr %s212, 8
          %s214 = scalar_lea.vmem [#allocation2], %s213
          %216 = vsyncadd %s211, 0
          %s217 = smul.addr %s18, 8
          %s218 = scalar_lea.hbm %s0, %s217
          %s220 = sshll.u32 %s218, 4
          %s221 = int_to_ptr.hbm [resolvable:$true] %s220
          %s222 = sshll.u32 %s214, 4
          %s223 = int_to_ptr.vmem [resolvable:$true] %s222
          %225 = dma.hbm_to_vmem [thread:$0]  %s221, 128, %s223, %s211
        $region36: #{tpu_custom_call.1} parent=31 // pred_fallthru
          _
      $region32: #{tpu_custom_call.1} parent=5 // pred_fallthru
        _
      %p226 = scmp.le.s32.totalorder 1, %s18
      %p227 = scmp.lt.s32.totalorder %s18, 3
      %p228 = pnand %p226, %p227
      %p229 = pneg %p228
      // Predicated region
      $region37: #{tpu_custom_call.1} parent=5 // pred_check
        _
      $region38: #{tpu_custom_call.1} parent=5 // pred_check_branch
        %231 = sbr.rel (%p228) target = $region40
      $region39: #{tpu_custom_call.1} parent=5 // pred_region
        %s232 = ssub.s32 %s18, 1
        %s233 = sand.u32 %s31, 1
        %s234 = scalar_lea.sflag [#allocation3], %s233
        %s235 = sand.u32 %s31, 1
        %s236 = smul.addr %s235, 8
        %s237 = scalar_lea.vmem [#allocation2], %s236
        // Predicated region
        $region41: #{tpu_custom_call.1} parent=39 // pred_check
          %p238 = pneg %p44
        $region42: #{tpu_custom_call.1} parent=39 // pred_check_branch
          %240 = sbr.rel (%p238) target = $region44
        $region43: #{tpu_custom_call.1} parent=39 // pred_region
          %242 = dma.done %s234, 128
        $region44: #{tpu_custom_call.1} parent=39 // pred_fallthru
          _
        // Predicated region
        $region45: #{tpu_custom_call.1} parent=39 // pred_check
          %p243 = pneg %p65
        $region46: #{tpu_custom_call.1} parent=39 // pred_check_branch
          %245 = sbr.rel (%p243) target = $region48
        $region47: #{tpu_custom_call.1} parent=39 // pred_region
          %247 = dma.done [#allocation6], 128
        $region48: #{tpu_custom_call.1} parent=39 // pred_fallthru
          _
        // Predicated region
        $region49: #{tpu_custom_call.1} parent=39 // pred_check
          %p248 = pneg %p107
        $region50: #{tpu_custom_call.1} parent=39 // pred_check_branch
          %250 = sbr.rel (%p248) target = $region52
        $region51: #{tpu_custom_call.1} parent=39 // pred_region
          %252 = dma.done [#allocation6], 256
        $region52: #{tpu_custom_call.1} parent=39 // pred_fallthru
          _
        %s253 = sand.u32 %s31, 1
        %s254 = scalar_lea.sflag [#allocation3], %s253
        %s255 = sand.u32 %s31, 1
        %s256 = smul.addr %s255, 8
        %s257 = scalar_lea.vmem [#allocation2], %s256
        %p258 = pneg %p44
        %p259 = pneg %p41
        %p260 = pneg %p65
        %p261 = pneg %p62
        %p262 = pneg %p86
        %p263 = pneg %p83
        %p264 = pneg %p107
        %p265 = pneg %p104
        %p266 = pneg %p128
        %p267 = pneg %p125
        %p268 = pneg %p154
        %p269 = pneg %p151
        %s270 = sand.u32 %s141, 1
        %s271 = scalar_lea.sflag [#allocation4], %s270
        %s272 = sand.u32 %s141, 1
        %s273 = smul.addr %s272, 8
        %s274 = scalar_lea.vmem [#allocation8], %s273
        %v276 = vld [vmem:[%s237] sm:$0xff]
        %v277 = vpack.c.bf16 %v276, %v276
        %v278 = vld [vmem:[#allocation5] sm:$0xf]
        %v279 = vld [vmem:[#allocation5 + $0x4] sm:$0xf]
        %v280 = vld [vmem:[%s2] sm:$0x1]
        %v282 = vperm.slane %v280, 0
        %v286 = vunpack.c.l.b16 %v278
        %v287 = vunpack.c.l.b16 %v279
        %v288 = vpack.c.b16 %v287, %v286
        %vm290 = vcmask 130048
        %v292 = vsel %vm290, %v277, 0
        %294 = vmatpush.bf16.msra.mxu0 0
        %295 = vmatpush.bf16.msra.mxu0 0
        %296 = vmatpush.bf16.msra.mxu0 0
        %297 = vmatpush.bf16.msra.mxu0 0
        %298 = vmatpush.bf16.msra.mxu0 0
        %299 = vmatpush.bf16.msra.mxu0 0
        %300 = vmatpush.bf16.msra.mxu0 0
        %301 = vmatpush.bf16.msra.mxu0 %v288
        %302 = vmatmul.bf16.gmra.mxu0 %v292
        %v303 = vpop.f32.mrf.mxu0
        %v304 = vadd.f32 %v282, %v303
        %v305 = vpop.f32.mrf.mxu0
        %306 = vdwg.mxu0
        %308 = vrot.lane.b32.xlu0 %v304, 120
        %v309 = vpop.permute.xlu0 %308
        %311 = vrot.lane.b32.xlu0 %v304, 112
        %v312 = vpop.permute.xlu0 %311
        %314 = vrot.lane.b32.xlu0 %v304, 104
        %v315 = vpop.permute.xlu0 %314
        %v317 = vpack.c.bf16 %v304, %v304
        %v318 = vpack.c.bf16 %v309, %v309
        %v319 = vpack.c.bf16 %v312, %v312
        %v320 = vpack.c.bf16 %v315, %v315
        %v322 = vunpack.c.l.b16 %v317
        %v323 = vpack.c.b16 %v322, %v322
        %324 = vrot.lane.b32.xlu0 %v323, 96
        %v325 = vpop.permute.xlu0 %324
        %vm326 = vcmask 64512
        %v328 = vsel %vm326, %v317, 0
        %v331 = vsel %vm326, %v325, 0
        %333 = vmatpush.bf16.xpose.msra.mxu0 0
        %334 = vmatpush.bf16.xpose.msra.mxu0 0
        %335 = vmatpush.bf16.xpose.msra.mxu0 0
        %336 = vmatpush.bf16.xpose.msra.mxu0 0
        %337 = vmatpush.bf16.xpose.msra.mxu0 0
        %338 = vmatpush.bf16.xpose.msra.mxu0 0
        %339 = vmatpush.bf16.xpose.msra.mxu0 0
        %340 = vmatpush.bf16.xpose.msra.mxu0 %v331
        %341 = vmatmul.bf16.gmra.mxu0 %v328
        %v342 = vpop.f32.mrf.mxu0
        %v343 = vadd.f32 0.0, %v342
        %v344 = vpop.f32.mrf.mxu0
        %345 = vdwg.mxu0
        %v347 = vunpack.c.l.b16 %v318
        %v348 = vpack.c.b16 %v347, %v347
        %349 = vrot.lane.b32.xlu0 %v348, 96
        %v350 = vpop.permute.xlu0 %349
        %v352 = vsel %vm326, %v318, 0
        %v355 = vsel %vm326, %v350, 0
        %357 = vmatpush.bf16.xpose.msra.mxu0 0
        %358 = vmatpush.bf16.xpose.msra.mxu0 0
        %359 = vmatpush.bf16.xpose.msra.mxu0 0
        %360 = vmatpush.bf16.xpose.msra.mxu0 0
        %361 = vmatpush.bf16.xpose.msra.mxu0 0
        %362 = vmatpush.bf16.xpose.msra.mxu0 0
        %363 = vmatpush.bf16.xpose.msra.mxu0 0
        %364 = vmatpush.bf16.xpose.msra.mxu0 %v355
        %365 = vmatmul.bf16.gmra.mxu0 %v352
        %v366 = vpop.f32.mrf.mxu0
        %v367 = vadd.f32 0.0, %v366
        %v368 = vpop.f32.mrf.mxu0
        %369 = vdwg.mxu0
        %v371 = vunpack.c.l.b16 %v319
        %v372 = vpack.c.b16 %v371, %v371
        %373 = vrot.lane.b32.xlu0 %v372, 96
        %v374 = vpop.permute.xlu0 %373
        %v376 = vsel %vm326, %v319, 0
        %v379 = vsel %vm326, %v374, 0
        %381 = vmatpush.bf16.xpose.msra.mxu0 0
        %382 = vmatpush.bf16.xpose.msra.mxu0 0
        %383 = vmatpush.bf16.xpose.msra.mxu0 0
        %384 = vmatpush.bf16.xpose.msra.mxu0 0
        %385 = vmatpush.bf16.xpose.msra.mxu0 0
        %386 = vmatpush.bf16.xpose.msra.mxu0 0
        %387 = vmatpush.bf16.xpose.msra.mxu0 0
        %388 = vmatpush.bf16.xpose.msra.mxu0 %v379
        %389 = vmatmul.bf16.gmra.mxu0 %v376
        %v390 = vpop.f32.mrf.mxu0
        %v391 = vadd.f32 0.0, %v390
        %v392 = vpop.f32.mrf.mxu0
        %393 = vdwg.mxu0
        %v395 = vunpack.c.l.b16 %v320
        %v396 = vpack.c.b16 %v395, %v395
        %397 = vrot.lane.b32.xlu0 %v396, 96
        %v398 = vpop.permute.xlu0 %397
        %v400 = vsel %vm326, %v320, 0
        %v403 = vsel %vm326, %v398, 0
        %405 = vmatpush.bf16.xpose.msra.mxu0 0
        %406 = vmatpush.bf16.xpose.msra.mxu0 0
        %407 = vmatpush.bf16.xpose.msra.mxu0 0
        %408 = vmatpush.bf16.xpose.msra.mxu0 0
        %409 = vmatpush.bf16.xpose.msra.mxu0 0
        %410 = vmatpush.bf16.xpose.msra.mxu0 0
        %411 = vmatpush.bf16.xpose.msra.mxu0 0
        %412 = vmatpush.bf16.xpose.msra.mxu0 %v403
        %413 = vmatmul.bf16.gmra.mxu0 %v400
        %v414 = vpop.f32.mrf.mxu0
        %v415 = vadd.f32 0.0, %v414
        %v416 = vpop.f32.mrf.mxu0
        %417 = vdwg.mxu0
        %v418 = vsel %vm326, %v343, -inf
        %419 = vmax.xlane.f32.xlu0 %v418
        %v420 = vpop.xlane.xlu0 %419
        %v421 = vsel %vm326, %v367, -inf
        %422 = vmax.xlane.f32.xlu0 %v421
        %v423 = vpop.xlane.xlu0 %422
        %v424 = vsel %vm326, %v391, -inf
        %425 = vmax.xlane.f32.xlu0 %v424
        %v426 = vpop.xlane.xlu0 %425
        %v427 = vsel %vm326, %v415, -inf
        %428 = vmax.xlane.f32.xlu0 %v427
        %v429 = vpop.xlane.xlu0 %428
        %v430 = vsub.f32 %v343, %v420
        %v431 = vsub.f32 %v367, %v423
        %v432 = vsub.f32 %v391, %v426
        %v433 = vsub.f32 %v415, %v429
        %v434 = vmul.f32 %v430, 1.442695
        %v435 = vpow.pop %v434
        %v436 = vmul.f32 %v431, 1.442695
        %v437 = vpow.pop %v436
        %v438 = vmul.f32 %v432, 1.442695
        %v439 = vpow.pop %v438
        %v440 = vmul.f32 %v433, 1.442695
        %v441 = vpow.pop %v440
        %v442 = vsel %vm326, %v435, 0.0
        %443 = vadd.xlane.f32.xlu0 %v442
        %v444 = vpop.xlane.xlu0 %443
        %v445 = vsel %vm326, %v437, 0.0
        %446 = vadd.xlane.f32.xlu0 %v445
        %v447 = vpop.xlane.xlu0 %446
        %v448 = vsel %vm326, %v439, 0.0
        %449 = vadd.xlane.f32.xlu0 %v448
        %v450 = vpop.xlane.xlu0 %449
        %v451 = vsel %vm326, %v441, 0.0
        %452 = vadd.xlane.f32.xlu0 %v451
        %v453 = vpop.xlane.xlu0 %452
        %v454 = vrcp.pop %v444
        %v455 = vrcp.pop %v447
        %v456 = vrcp.pop %v450
        %v457 = vrcp.pop %v453
        %v458 = vmul.f32 %v435, %v454
        %v459 = vmul.f32 %v437, %v455
        %v460 = vmul.f32 %v439, %v456
        %v461 = vmul.f32 %v441, %v457
        %v462 = vpack.c.bf16 %v458, %v458
        %v463 = vpack.c.bf16 %v459, %v459
        %v464 = vpack.c.bf16 %v460, %v460
        %v465 = vpack.c.bf16 %v461, %v461
        %466 = vrot.lane.b32.xlu0 %v323, 64
        %v467 = vpop.permute.xlu0 %466
        %v469 = vsel %vm326, %v462, 0
        %vm471 = vcmask 1043456
        %v473 = vsel %vm471, %v467, 0
        %475 = vmatpush.bf16.msra.mxu0 0
        %476 = vmatpush.bf16.msra.mxu0 0
        %477 = vmatpush.bf16.msra.mxu0 0
        %478 = vmatpush.bf16.msra.mxu0 0
        %479 = vmatpush.bf16.msra.mxu0 0
        %480 = vmatpush.bf16.msra.mxu0 0
        %481 = vmatpush.bf16.msra.mxu0 0
        %482 = vmatpush.bf16.msra.mxu0 %v473
        %483 = vmatmul.bf16.gmra.mxu0 %v469
        %v484 = vpop.f32.mrf.mxu0
        %v485 = vadd.f32 0.0, %v484
        %v486 = vpop.f32.mrf.mxu0
        %487 = vdwg.mxu0
        %488 = vrot.lane.b32.xlu0 %v348, 64
        %v489 = vpop.permute.xlu0 %488
        %v491 = vsel %vm326, %v463, 0
        %v494 = vsel %vm471, %v489, 0
        %496 = vmatpush.bf16.msra.mxu0 0
        %497 = vmatpush.bf16.msra.mxu0 0
        %498 = vmatpush.bf16.msra.mxu0 0
        %499 = vmatpush.bf16.msra.mxu0 0
        %500 = vmatpush.bf16.msra.mxu0 0
        %501 = vmatpush.bf16.msra.mxu0 0
        %502 = vmatpush.bf16.msra.mxu0 0
        %503 = vmatpush.bf16.msra.mxu0 %v494
        %504 = vmatmul.bf16.gmra.mxu0 %v491
        %v505 = vpop.f32.mrf.mxu0
        %v506 = vadd.f32 0.0, %v505
        %v507 = vpop.f32.mrf.mxu0
        %508 = vdwg.mxu0
        %509 = vrot.lane.b32.xlu0 %v372, 64
        %v510 = vpop.permute.xlu0 %509
        %v512 = vsel %vm326, %v464, 0
        %v515 = vsel %vm471, %v510, 0
        %517 = vmatpush.bf16.msra.mxu0 0
        %518 = vmatpush.bf16.msra.mxu0 0
        %519 = vmatpush.bf16.msra.mxu0 0
        %520 = vmatpush.bf16.msra.mxu0 0
        %521 = vmatpush.bf16.msra.mxu0 0
        %522 = vmatpush.bf16.msra.mxu0 0
        %523 = vmatpush.bf16.msra.mxu0 0
        %524 = vmatpush.bf16.msra.mxu0 %v515
        %525 = vmatmul.bf16.gmra.mxu0 %v512
        %v526 = vpop.f32.mrf.mxu0
        %v527 = vadd.f32 0.0, %v526
        %v528 = vpop.f32.mrf.mxu0
        %529 = vdwg.mxu0
        %530 = vrot.lane.b32.xlu0 %v396, 64
        %v531 = vpop.permute.xlu0 %530
        %v533 = vsel %vm326, %v465, 0
        %v536 = vsel %vm471, %v531, 0
        %538 = vmatpush.bf16.msra.mxu0 0
        %539 = vmatpush.bf16.msra.mxu0 0
        %540 = vmatpush.bf16.msra.mxu0 0
        %541 = vmatpush.bf16.msra.mxu0 0
        %542 = vmatpush.bf16.msra.mxu0 0
        %543 = vmatpush.bf16.msra.mxu0 0
        %544 = vmatpush.bf16.msra.mxu0 0
        %545 = vmatpush.bf16.msra.mxu0 %v536
        %546 = vmatmul.bf16.gmra.mxu0 %v533
        %v547 = vpop.f32.mrf.mxu0
        %v548 = vadd.f32 0.0, %v547
        %v549 = vpop.f32.mrf.mxu0
        %550 = vdwg.mxu0
        %v551 = vadd.f32 %v304, %v485
        %v552 = vadd.f32 %v309, %v506
        %v553 = vadd.f32 %v312, %v527
        %v554 = vadd.f32 %v315, %v548
        %556 = vrot.lane.b32.xlu0 %v552, 8
        %v557 = vpop.permute.xlu0 %556
        %560 = vrot.lane.b32.xlu0 %v553, 16
        %v561 = vpop.permute.xlu0 %560
        %564 = vrot.lane.b32.xlu0 %v554, 24
        %v565 = vpop.permute.xlu0 %564
        %v567 = vsel %vm326, %v551, %v557
        %v568 = vsel %vm290, %v567, %v561
        %vm569 = vcmask 195584
        %v570 = vsel %vm569, %v568, %v565
        %v571 = vpack.c.bf16 %v570, %v570
        %v572 = vld [vmem:[#allocation7] sm:$0xf]
        %v573 = vld [vmem:[#allocation7 + $0x4] sm:$0xf]
        %v574 = vld [vmem:[#allocation7 + $0x8] sm:$0xf]
        %v575 = vld [vmem:[#allocation7 + $0xc] sm:$0xf]
        %v576 = vld [vmem:[%s4] sm:$0x1]
        %v578 = vperm.slane %v576, 0
        %v584 = vunpack.c.l.b16 %v572
        %v585 = vunpack.c.l.b16 %v573
        %v586 = vunpack.c.l.b16 %v574
        %v587 = vunpack.c.l.b16 %v575
        %v588 = vpack.c.b16 %v585, %v584
        %v589 = vpack.c.b16 %v587, %v586
        %vm592 = vcmask 261120
        %v594 = vsel %vm592, %v571, 0
        %596 = vmatpush.bf16.msra.mxu0 0
        %597 = vmatpush.bf16.msra.mxu0 0
        %598 = vmatpush.bf16.msra.mxu0 0
        %599 = vmatpush.bf16.msra.mxu0 0
        %600 = vmatpush.bf16.msra.mxu0 0
        %601 = vmatpush.bf16.msra.mxu0 0
        %602 = vmatpush.bf16.msra.mxu0 %v589
        %603 = vmatpush.bf16.msra.mxu0 %v588
        %604 = vmatmul.bf16.gmra.mxu0 %v594
        %v605 = vpop.f32.mrf.mxu0
        %v606 = vadd.f32 %v578, %v605
        %v607 = vpop.f32.mrf.mxu0
        %608 = vdwg.mxu0
        %v609 = vmax.f32 %v606, 0.0
        %v610 = vadd.f32 %v570, %v609
        %611 = vst.msk [vmem:[%s274] sm:$0xff] %vm592, %v610
        %s612 = sand.u32 %s141, 1
        %s613 = scalar_lea.sflag [#allocation4], %s612
        %s614 = sand.u32 %s141, 1
        %s615 = smul.addr %s614, 8
        %s616 = scalar_lea.vmem [#allocation8], %s615
        // Predicated region
        $region53: #{tpu_custom_call.1} parent=39 // pred_check
          %p617 = pneg %p151
        $region54: #{tpu_custom_call.1} parent=39 // pred_check_branch
          %619 = sbr.rel (%p617) target = $region56
        $region55: #{tpu_custom_call.1} parent=39 // pred_region
          %621 = vsyncadd %s613, 0
          %s622 = smul.addr %s23, 8
          %s623 = scalar_lea.hbm %s5, %s622
          %s625 = sshll.u32 %s616, 4
          %s626 = int_to_ptr.vmem [resolvable:$true] %s625
          %s627 = sshll.u32 %s623, 4
          %s628 = int_to_ptr.hbm [resolvable:$true] %s627
          %630 = dma.vmem_to_hbm [thread:$0]  %s626, 128, %s628, %s613
        $region56: #{tpu_custom_call.1} parent=39 // pred_fallthru
          _
      $region40: #{tpu_custom_call.1} parent=5 // pred_fallthru
        _
      %p631 = scmp.le.s32.totalorder 2, %s18
      // Predicated region
      $region57: #{tpu_custom_call.1} parent=5 // pred_check
        %p632 = pneg %p631
      $region58: #{tpu_custom_call.1} parent=5 // pred_check_branch
        %634 = sbr.rel (%p632) target = $region60
      $region59: #{tpu_custom_call.1} parent=5 // pred_region
        %s635 = ssub.s32 %s18, 2
        // Predicated region
        $region61: #{tpu_custom_call.1} parent=59 // pred_check
          %p636 = pneg %p157
        $region62: #{tpu_custom_call.1} parent=59 // pred_check_branch
          %638 = sbr.rel (%p636) target = $region64
        $region63: #{tpu_custom_call.1} parent=59 // pred_region
          %s639 = sand.u32 %s142, 1
          %s640 = scalar_lea.sflag [#allocation4], %s639
          %s641 = sand.u32 %s142, 1
          %s642 = smul.addr %s641, 8
          %s643 = scalar_lea.vmem [#allocation8], %s642
          %645 = dma.done %s640, 128
        $region64: #{tpu_custom_call.1} parent=59 // pred_fallthru
          _
      $region60: #{tpu_custom_call.1} parent=5 // pred_fallthru
        _
    $region6: #{tpu_custom_call.1} parent=1 // loop_footer
      %s22 = sadd.s32 1, %s18
    $region7: #{tpu_custom_call.1} parent=1 // loop_footer_branch
      %17 = sbr.rel target = $region3
    $region8: #{tpu_custom_call.1} parent=1 // loop_exit
      _
    %646 = vsyncpa [#allocation3], 1
    %s647 = scalar_lea.sflag [#allocation3], 1
    %648 = vsyncpa %s647, 1
    %649 = vsyncpa [#allocation6], 1
    %650 = vsyncpa [#allocation4], 1
    %s651 = scalar_lea.sflag [#allocation4], 1
    %652 = vsyncpa %s651, 1

</llo_original>
